<compile_context>
chip_gen: v7x
topology: tpu7x:2x2x1
jax: 0.10.0
libtpu: 0.0.40
codegen_flags: <defaults>
</compile_context>

<pallas_src>
import functools

import jax
import jax.numpy as jnp
from jax import lax
from jax.experimental import pallas as pl
from jax.experimental.pallas import tpu as pltpu


def _concatnet_kernel(df_ref, pe_ref,
                      w_in_df_ref, w_in_pe_ref, b_in_ref,
                      w_qkv_ref, b_qkv_ref,
                      w_o_ref, b_o_ref,
                      w_tr_ref, b_tr_ref,
                      w_dm_ref,
                      w_site_ref, b_site_ref,
                      dm_out_ref, site_out_ref,
                      *, num_heads):
    cdt = w_qkv_ref.dtype                    # MXU operand dtype (bf16); f32 accum

    df = df_ref[0]                           # [L, Fd] f32
    pe = pe_ref[0]                           # [L, Dp] f32

    # ---- Input projection: concat folded into two fused MXU dots ----------
    h = (jnp.dot(df.astype(cdt), w_in_df_ref[...],
                 preferred_element_type=jnp.float32)
         + jnp.dot(pe.astype(cdt), w_in_pe_ref[...],
                   preferred_element_type=jnp.float32)
         + b_in_ref[...])
    h = jax.nn.relu(h)                       # [L, D] f32
    L, D = h.shape
    dh = D // num_heads

    # ---- Fused QKV projection: one lane-dense [L, 3D] matmul --------------
    # 1/sqrt(dh) is pre-folded into the q-third of w_qkv / b_qkv.
    qkv = (jnp.dot(h.astype(cdt), w_qkv_ref[...],
                   preferred_element_type=jnp.float32)
           + b_qkv_ref[...])                 # [L, 3D] f32

    def split_heads(x2d):                    # [L, D] -> [H, L, dh]
        return jnp.stack(
            [x2d[:, hh * dh:(hh + 1) * dh] for hh in range(num_heads)], axis=0)

    q = split_heads(qkv[:, :D])
    k = split_heads(qkv[:, D:2 * D])
    v = split_heads(qkv[:, 2 * D:])

    # ---- Scores + softmax (f32 VPU/EUP math; bf16 only at the MXU) --------
    s = jnp.einsum('hqd,hkd->hqk', q.astype(cdt), k.astype(cdt),
                   preferred_element_type=jnp.float32)             # [H, L, L]
    s_max = jnp.max(s, axis=-1, keepdims=True)
    e = jnp.exp(s - s_max)
    denom = jnp.sum(e, axis=-1, keepdims=True)
    # NOTE: set approx=False (or exact divide) when bit-comparing vs PyTorch.
    p = e * pl.reciprocal(denom, approx=True)

    ctx = jnp.einsum('hqk,hkd->hqd', p.astype(cdt), v.astype(cdt),
                     preferred_element_type=jnp.float32)           # [H, L, dh]

    # ---- Output projection: concat heads on lanes -> one K=D matmul -------
    ctx_cat = jnp.concatenate(
        [ctx[hh] for hh in range(num_heads)], axis=-1)             # [L, H*dh]
    attn_out = (jnp.dot(ctx_cat.astype(cdt), w_o_ref[...],
                        preferred_element_type=jnp.float32)
                + b_o_ref[...])                                    # [L, D]

    h = h + attn_out                         # residual

    # ---- Transition (the shared layer from get_last_shared_layer) ---------
    t = jax.nn.relu(
        jnp.dot(h.astype(cdt), w_tr_ref[...],
                preferred_element_type=jnp.float32) + b_tr_ref[...])   # [L, D]

    # ---- Head 1: symmetric bilinear distance map [L, L] --------------------
    # W_dm is pre-symmetrized so t @ W_sym @ t^T is exactly symmetric; rhs is
    # contracted on its last dim -> no materialized t.T, no dm.T + add.
    tw = jnp.dot(t.astype(cdt), w_dm_ref[...],
                 preferred_element_type=jnp.float32)               # [L, D]
    dm = lax.dot_general(tw.astype(cdt), t.astype(cdt),
                         (((1,), (1,)), ((), ())),
                         preferred_element_type=jnp.float32)       # [L, L]
    dm_out_ref[0] = dm.astype(dm_out_ref.dtype)

    # ---- Head 2: per-residue site probability, lane-dense [1, L] -----------
    site = lax.dot_general(w_site_ref[...], t.astype(cdt),
                           (((1,), (1,)), ((), ())),
                           preferred_element_type=jnp.float32)     # [1, L]
    site_out_ref[0] = jax.nn.sigmoid(site + b_site_ref[...])


def concatnet_forward(data_df, protein_embedding, params, *, num_heads,
                      mxu_dtype=jnp.bfloat16, dm_dtype=jnp.float32,
                      vmem_limit_bytes=48 * 1024 * 1024):
    B, L, Fd = data_df.shape
    _, _, Dp = protein_embedding.shape
    D = params["w_in"].shape[1]
    assert D % num_heads == 0
    dh = D // num_heads
    scale = 1.0 / float(dh) ** 0.5
    f32 = jnp.float32

    # ---- Wrapper-side weight preprocessing (mathematically equivalent) ----
    w_in_df = params["w_in"][:Fd].astype(mxu_dtype)                  # [Fd, D]
    w_in_pe = params["w_in"][Fd:].astype(mxu_dtype)                  # [Dp, D]
    b_in = params["b_in"].astype(f32)
    # Fused QKV weight [D, 3D]; scale folded into the q third.
    w_qkv = jnp.concatenate(
        [params["w_q"] * scale, params["w_k"], params["w_v"]],
        axis=1).astype(mxu_dtype)
    b_qkv = jnp.concatenate(
        [params["b_q"] * scale, params["b_k"], params["b_v"]],
        axis=1).astype(f32)                                          # [1, 3D]
    w_o = params["w_o"].astype(mxu_dtype)      # [H*dh, D] rows already head-major
    b_o = params["b_o"].astype(f32)
    w_tr = params["w_tr"].astype(mxu_dtype)
    b_tr = params["b_tr"].astype(f32)
    w_dm_sym = (0.5 * (params["w_dm"] + params["w_dm"].T)).astype(mxu_dtype)
    w_site = params["w_site"].T.astype(mxu_dtype)                    # [1, D]
    b_site = params["b_site"].astype(f32)

    weight_list = [
        w_in_df, w_in_pe, b_in,
        w_qkv, b_qkv,
        w_o, b_o,
        w_tr, b_tr,
        w_dm_sym,
        w_site, b_site,
    ]

    # Weights never change across the batch grid: constant index_map + single
    # buffer (no pointless double-buffering -> halves their VMEM footprint).
    def weight_spec(arr):
        nd = arr.ndim
        return pl.BlockSpec(arr.shape, lambda b, _nd=nd: (0,) * _nd,
                            pipeline_mode=pl.Buffered(1))

    in_specs = [
        pl.BlockSpec((1, L, Fd), lambda b: (b, 0, 0)),
        pl.BlockSpec((1, L, Dp), lambda b: (b, 0, 0)),
    ] + [weight_spec(w) for w in weight_list]

    out_specs = (
        pl.BlockSpec((1, L, L), lambda b: (b, 0, 0)),
        pl.BlockSpec((1, 1, L), lambda b: (b, 0, 0)),    # lane-dense site row
    )
    out_shape = (
        jax.ShapeDtypeStruct((B, L, L), dm_dtype),
        jax.ShapeDtypeStruct((B, 1, L), jnp.float32),
    )

    kernel = functools.partial(_concatnet_kernel, num_heads=num_heads)

    dm, site_row = pl.pallas_call(
        kernel,
        out_shape=out_shape,
        grid_spec=pltpu.PrefetchScalarGridSpec(
            num_scalar_prefetch=0,
            grid=(B,),
            in_specs=in_specs,
            out_specs=out_specs,
        ),
        compiler_params=pltpu.CompilerParams(
            dimension_semantics=("parallel",),
            vmem_limit_bytes=vmem_limit_bytes,
        ),
    )(data_df, protein_embedding, *weight_list)

    # Callers expect [B, L, 1] for the site head.
    return dm, site_row.reshape(B, L, 1)


def _xavier_normal(key, fan_in, fan_out):
    std = (2.0 / (fan_in + fan_out)) ** 0.5
    return std * jax.random.normal(key, (fan_in, fan_out), dtype=jnp.float32)


def init_params(key, f_in, d):
    ks = jax.random.split(key, 8)
    return {
        "w_in":  _xavier_normal(ks[0], f_in, d), "b_in":  jnp.zeros((1, d), jnp.float32),
        "w_q":   _xavier_normal(ks[1], d, d),    "b_q":   jnp.zeros((1, d), jnp.float32),
        "w_k":   _xavier_normal(ks[2], d, d),    "b_k":   jnp.zeros((1, d), jnp.float32),
        "w_v":   _xavier_normal(ks[3], d, d),    "b_v":   jnp.zeros((1, d), jnp.float32),
        "w_o":   _xavier_normal(ks[4], d, d),    "b_o":   jnp.zeros((1, d), jnp.float32),
        "w_tr":  _xavier_normal(ks[5], d, d),    "b_tr":  jnp.zeros((1, d), jnp.float32),
        "w_dm":  _xavier_normal(ks[6], d, d),
        "w_site": _xavier_normal(ks[7], d, 1),   "b_site": jnp.zeros((1, 1), jnp.float32),
    }


if __name__ == "__main__":
    key = jax.random.PRNGKey(0)
    B, L = 2, 8                   # batch, sequence length (residues)
    Fd, Dp = 16, 32               # data_df feature dim, protein-embedding dim
    D = 32                        # args['multi_head_attention_dim']
    H = 4                         # args['multi_head_attention_head']

    k_df, k_pe, k_par = jax.random.split(key, 3)
    data_df = jax.random.normal(k_df, (B, L, Fd), dtype=jnp.float32)
    protein_embedding = jax.random.normal(k_pe, (B, L, Dp), dtype=jnp.float32)
    params = init_params(k_par, Fd + Dp, D)

    out_distance_map, out_site = concatnet_forward(
        data_df, protein_embedding, params, num_heads=H)
    jax.block_until_ready((out_distance_map, out_site))

    assert out_distance_map.shape == (B, L, L)
    assert out_site.shape == (B, L, 1)
    print("KERNEL_OK")
</pallas_src>

<mosaic_0001>
module attributes {stable_mosaic.version = 11 : i64} {
  func.func @_concatnet_kernel(%arg0: i32, %arg1: memref<1x8x16xf32, #tpu.memory_space<vmem>>, %arg2: memref<1x8x32xf32, #tpu.memory_space<vmem>>, %arg3: memref<16x32xbf16, #tpu.memory_space<vmem>>, %arg4: memref<32x32xbf16, #tpu.memory_space<vmem>>, %arg5: memref<1x32xf32, #tpu.memory_space<vmem>>, %arg6: memref<32x96xbf16, #tpu.memory_space<vmem>>, %arg7: memref<1x96xf32, #tpu.memory_space<vmem>>, %arg8: memref<32x32xbf16, #tpu.memory_space<vmem>>, %arg9: memref<1x32xf32, #tpu.memory_space<vmem>>, %arg10: memref<32x32xbf16, #tpu.memory_space<vmem>>, %arg11: memref<1x32xf32, #tpu.memory_space<vmem>>, %arg12: memref<32x32xbf16, #tpu.memory_space<vmem>>, %arg13: memref<1x32xbf16, #tpu.memory_space<vmem>>, %arg14: memref<1x1xf32, #tpu.memory_space<vmem>>, %arg15: memref<1x8x8xf32, #tpu.memory_space<vmem>>, %arg16: memref<1x1x8xf32, #tpu.memory_space<vmem>>) attributes {dimension_semantics = [#tpu.dimension_semantics<parallel>], iteration_bounds = array<i64: 2>, scalar_prefetch = 0 : i64, scratch_operands = 0 : i64, tpu.core_type = #tpu.core_type<tc>, window_params = [{transform_indices = @transform_0, window_bounds = array<i64: 1, 8, 16>}, {transform_indices = @transform_1, window_bounds = array<i64: 1, 8, 32>}, {pipeline_mode = #tpu.pipeline_mode<synchronous>, transform_indices = @transform_2, window_bounds = array<i64: 16, 32>}, {pipeline_mode = #tpu.pipeline_mode<synchronous>, transform_indices = @transform_3, window_bounds = array<i64: 32, 32>}, {pipeline_mode = #tpu.pipeline_mode<synchronous>, transform_indices = @transform_4, window_bounds = array<i64: 1, 32>}, {pipeline_mode = #tpu.pipeline_mode<synchronous>, transform_indices = @transform_5, window_bounds = array<i64: 32, 96>}, {pipeline_mode = #tpu.pipeline_mode<synchronous>, transform_indices = @transform_6, window_bounds = array<i64: 1, 96>}, {pipeline_mode = #tpu.pipeline_mode<synchronous>, transform_indices = @transform_7, window_bounds = array<i64: 32, 32>}, {pipeline_mode = #tpu.pipeline_mode<synchronous>, transform_indices = @transform_8, window_bounds = array<i64: 1, 32>}, {pipeline_mode = #tpu.pipeline_mode<synchronous>, transform_indices = @transform_9, window_bounds = array<i64: 32, 32>}, {pipeline_mode = #tpu.pipeline_mode<synchronous>, transform_indices = @transform_10, window_bounds = array<i64: 1, 32>}, {pipeline_mode = #tpu.pipeline_mode<synchronous>, transform_indices = @transform_11, window_bounds = array<i64: 32, 32>}, {pipeline_mode = #tpu.pipeline_mode<synchronous>, transform_indices = @transform_12, window_bounds = array<i64: 1, 32>}, {pipeline_mode = #tpu.pipeline_mode<synchronous>, transform_indices = @transform_13, window_bounds = array<i64: 1, 1>}, {transform_indices = @transform_14, window_bounds = array<i64: 1, 8, 8>}, {transform_indices = @transform_15, window_bounds = array<i64: 1, 1, 8>}]} {
    %c0 = arith.constant 0 : index
    %c0_0 = arith.constant 0 : index
    %c0_1 = arith.constant 0 : index
    %0 = vector.load %arg1[%c0, %c0_0, %c0_1] : memref<1x8x16xf32, #tpu.memory_space<vmem>>, vector<1x8x16xf32>
    %1 = vector.shape_cast %0 : vector<1x8x16xf32> to vector<8x16xf32>
    %c0_2 = arith.constant 0 : index
    %c0_3 = arith.constant 0 : index
    %c0_4 = arith.constant 0 : index
    %2 = vector.load %arg2[%c0_2, %c0_3, %c0_4] : memref<1x8x32xf32, #tpu.memory_space<vmem>>, vector<1x8x32xf32>
    %3 = vector.shape_cast %2 : vector<1x8x32xf32> to vector<8x32xf32>
    %4 = arith.truncf %1 : vector<8x16xf32> to vector<8x16xbf16>
    %c0_5 = arith.constant 0 : index
    %c0_6 = arith.constant 0 : index
    %5 = vector.load %arg3[%c0_5, %c0_6] : memref<16x32xbf16, #tpu.memory_space<vmem>>, vector<16x32xbf16>
    %cst = arith.constant dense<0.000000e+00> : vector<8x32xf32>
    %6 = tpu.matmul %4, %5, %cst {dimension_numbers = #tpu.dot_dimension_numbers<[1], [0], [0], [1], [0, 0, 1, 1], [], []>} : vector<8x16xbf16>, vector<16x32xbf16>, vector<8x32xf32> -> vector<8x32xf32>
    %7 = arith.truncf %3 : vector<8x32xf32> to vector<8x32xbf16>
    %c0_7 = arith.constant 0 : index
    %c0_8 = arith.constant 0 : index
    %8 = vector.load %arg4[%c0_7, %c0_8] : memref<32x32xbf16, #tpu.memory_space<vmem>>, vector<32x32xbf16>
    %cst_9 = arith.constant dense<0.000000e+00> : vector<8x32xf32>
    %9 = tpu.matmul %7, %8, %cst_9 {dimension_numbers = #tpu.dot_dimension_numbers<[1], [0], [0], [1], [0, 0, 1, 1], [], []>} : vector<8x32xbf16>, vector<32x32xbf16>, vector<8x32xf32> -> vector<8x32xf32>
    %10 = arith.addf %6, %9 : vector<8x32xf32>
    %c0_10 = arith.constant 0 : index
    %c0_11 = arith.constant 0 : index
    %11 = vector.load %arg5[%c0_10, %c0_11] : memref<1x32xf32, #tpu.memory_space<vmem>>, vector<1x32xf32>
    %12 = vector.broadcast %11 : vector<1x32xf32> to vector<8x32xf32>
    %13 = arith.addf %10, %12 : vector<8x32xf32>
    %cst_12 = arith.constant 0.000000e+00 : f32
    %14 = vector.broadcast %cst_12 : f32 to vector<8x32xf32>
    %15 = arith.maximumf %13, %14 : vector<8x32xf32>
    %16 = arith.truncf %15 : vector<8x32xf32> to vector<8x32xbf16>
    %c0_13 = arith.constant 0 : index
    %c0_14 = arith.constant 0 : index
    %17 = vector.load %arg6[%c0_13, %c0_14] : memref<32x96xbf16, #tpu.memory_space<vmem>>, vector<32x96xbf16>
    %cst_15 = arith.constant dense<0.000000e+00> : vector<8x96xf32>
    %18 = tpu.matmul %16, %17, %cst_15 {dimension_numbers = #tpu.dot_dimension_numbers<[1], [0], [0], [1], [0, 0, 1, 1], [], []>} : vector<8x32xbf16>, vector<32x96xbf16>, vector<8x96xf32> -> vector<8x96xf32>
    %c0_16 = arith.constant 0 : index
    %c0_17 = arith.constant 0 : index
    %19 = vector.load %arg7[%c0_16, %c0_17] : memref<1x96xf32, #tpu.memory_space<vmem>>, vector<1x96xf32>
    %20 = vector.broadcast %19 : vector<1x96xf32> to vector<8x96xf32>
    %21 = arith.addf %18, %20 : vector<8x96xf32>
    %22 = vector.extract_strided_slice %21 {offsets = [0, 0], sizes = [8, 32], strides = [1, 1]} : vector<8x96xf32> to vector<8x32xf32>
    %23 = vector.extract_strided_slice %22 {offsets = [0, 0], sizes = [8, 8], strides = [1, 1]} : vector<8x32xf32> to vector<8x8xf32>
    %24 = vector.extract_strided_slice %22 {offsets = [0, 8], sizes = [8, 8], strides = [1, 1]} : vector<8x32xf32> to vector<8x8xf32>
    %25 = vector.extract_strided_slice %22 {offsets = [0, 16], sizes = [8, 8], strides = [1, 1]} : vector<8x32xf32> to vector<8x8xf32>
    %26 = vector.extract_strided_slice %22 {offsets = [0, 24], sizes = [8, 8], strides = [1, 1]} : vector<8x32xf32> to vector<8x8xf32>
    %27 = vector.shape_cast %23 : vector<8x8xf32> to vector<1x8x8xf32>
    %28 = vector.shape_cast %24 : vector<8x8xf32> to vector<1x8x8xf32>
    %29 = vector.shape_cast %25 : vector<8x8xf32> to vector<1x8x8xf32>
    %30 = vector.shape_cast %26 : vector<8x8xf32> to vector<1x8x8xf32>
    %31 = tpu.concatenate %27, %28, %29, %30 in 0 : vector<1x8x8xf32>, vector<1x8x8xf32>, vector<1x8x8xf32>, vector<1x8x8xf32> -> vector<4x8x8xf32>
    %32 = vector.extract_strided_slice %21 {offsets = [0, 32], sizes = [8, 32], strides = [1, 1]} : vector<8x96xf32> to vector<8x32xf32>
    %33 = vector.extract_strided_slice %32 {offsets = [0, 0], sizes = [8, 8], strides = [1, 1]} : vector<8x32xf32> to vector<8x8xf32>
    %34 = vector.extract_strided_slice %32 {offsets = [0, 8], sizes = [8, 8], strides = [1, 1]} : vector<8x32xf32> to vector<8x8xf32>
    %35 = vector.extract_strided_slice %32 {offsets = [0, 16], sizes = [8, 8], strides = [1, 1]} : vector<8x32xf32> to vector<8x8xf32>
    %36 = vector.extract_strided_slice %32 {offsets = [0, 24], sizes = [8, 8], strides = [1, 1]} : vector<8x32xf32> to vector<8x8xf32>
    %37 = vector.shape_cast %33 : vector<8x8xf32> to vector<1x8x8xf32>
    %38 = vector.shape_cast %34 : vector<8x8xf32> to vector<1x8x8xf32>
    %39 = vector.shape_cast %35 : vector<8x8xf32> to vector<1x8x8xf32>
    %40 = vector.shape_cast %36 : vector<8x8xf32> to vector<1x8x8xf32>
    %41 = tpu.concatenate %37, %38, %39, %40 in 0 : vector<1x8x8xf32>, vector<1x8x8xf32>, vector<1x8x8xf32>, vector<1x8x8xf32> -> vector<4x8x8xf32>
    %42 = vector.extract_strided_slice %21 {offsets = [0, 64], sizes = [8, 32], strides = [1, 1]} : vector<8x96xf32> to vector<8x32xf32>
    %43 = vector.extract_strided_slice %42 {offsets = [0, 0], sizes = [8, 8], strides = [1, 1]} : vector<8x32xf32> to vector<8x8xf32>
    %44 = vector.extract_strided_slice %42 {offsets = [0, 8], sizes = [8, 8], strides = [1, 1]} : vector<8x32xf32> to vector<8x8xf32>
    %45 = vector.extract_strided_slice %42 {offsets = [0, 16], sizes = [8, 8], strides = [1, 1]} : vector<8x32xf32> to vector<8x8xf32>
    %46 = vector.extract_strided_slice %42 {offsets = [0, 24], sizes = [8, 8], strides = [1, 1]} : vector<8x32xf32> to vector<8x8xf32>
    %47 = vector.shape_cast %43 : vector<8x8xf32> to vector<1x8x8xf32>
    %48 = vector.shape_cast %44 : vector<8x8xf32> to vector<1x8x8xf32>
    %49 = vector.shape_cast %45 : vector<8x8xf32> to vector<1x8x8xf32>
    %50 = vector.shape_cast %46 : vector<8x8xf32> to vector<1x8x8xf32>
    %51 = tpu.concatenate %47, %48, %49, %50 in 0 : vector<1x8x8xf32>, vector<1x8x8xf32>, vector<1x8x8xf32>, vector<1x8x8xf32> -> vector<4x8x8xf32>
    %52 = arith.truncf %31 : vector<4x8x8xf32> to vector<4x8x8xbf16>
    %53 = arith.truncf %41 : vector<4x8x8xf32> to vector<4x8x8xbf16>
    "tpu.trace_start"() <{level = 10 : i32, message = "hqd,hkd->hqk"}> : () -> ()
    %cst_18 = arith.constant dense<0.000000e+00> : vector<4x8x8xf32>
    %54 = tpu.matmul %52, %53, %cst_18 {dimension_numbers = #tpu.dot_dimension_numbers<[2], [2], [1], [1], [0, 0, 0, 1, 1, 1], [0], [0]>} : vector<4x8x8xbf16>, vector<4x8x8xbf16>, vector<4x8x8xf32> -> vector<4x8x8xf32>
    "tpu.trace_stop"() : () -> ()
    %cst_19 = arith.constant dense<0xFF800000> : vector<4x8xf32>
    %55 = vector.multi_reduction <maximumf>, %54, %cst_19 [2] : vector<4x8x8xf32> to vector<4x8xf32>
    %56 = vector.shape_cast %55 : vector<4x8xf32> to vector<4x8x1xf32>
    %57 = vector.broadcast %56 : vector<4x8x1xf32> to vector<4x8x8xf32>
    %58 = arith.subf %54, %57 : vector<4x8x8xf32>
    %59 = math.exp %58 : vector<4x8x8xf32>
    %cst_20 = arith.constant dense<0.000000e+00> : vector<4x8xf32>
    %60 = vector.multi_reduction <add>, %59, %cst_20 [2] : vector<4x8x8xf32> to vector<4x8xf32>
    %61 = vector.shape_cast %60 : vector<4x8xf32> to vector<4x8x1xf32>
    %62 = tpu.reciprocal %61 {approx = true} : vector<4x8x1xf32> -> vector<4x8x1xf32>
    %63 = vector.broadcast %62 : vector<4x8x1xf32> to vector<4x8x8xf32>
    %64 = arith.mulf %59, %63 : vector<4x8x8xf32>
    %65 = arith.truncf %64 : vector<4x8x8xf32> to vector<4x8x8xbf16>
    %66 = arith.truncf %51 : vector<4x8x8xf32> to vector<4x8x8xbf16>
    "tpu.trace_start"() <{level = 10 : i32, message = "hqk,hkd->hqd"}> : () -> ()
    %cst_21 = arith.constant dense<0.000000e+00> : vector<4x8x8xf32>
    %67 = tpu.matmul %65, %66, %cst_21 {dimension_numbers = #tpu.dot_dimension_numbers<[2], [1], [1], [2], [0, 0, 0, 1, 1, 2], [0], [0]>} : vector<4x8x8xbf16>, vector<4x8x8xbf16>, vector<4x8x8xf32> -> vector<4x8x8xf32>
    "tpu.trace_stop"() : () -> ()
    %68 = vector.extract_strided_slice %67 {offsets = [0, 0, 0], sizes = [1, 8, 8], strides = [1, 1, 1]} : vector<4x8x8xf32> to vector<1x8x8xf32>
    %69 = vector.shape_cast %68 : vector<1x8x8xf32> to vector<8x8xf32>
    %70 = vector.extract_strided_slice %67 {offsets = [1, 0, 0], sizes = [1, 8, 8], strides = [1, 1, 1]} : vector<4x8x8xf32> to vector<1x8x8xf32>
    %71 = vector.shape_cast %70 : vector<1x8x8xf32> to vector<8x8xf32>
    %72 = vector.extract_strided_slice %67 {offsets = [2, 0, 0], sizes = [1, 8, 8], strides = [1, 1, 1]} : vector<4x8x8xf32> to vector<1x8x8xf32>
    %73 = vector.shape_cast %72 : vector<1x8x8xf32> to vector<8x8xf32>
    %74 = vector.extract_strided_slice %67 {offsets = [3, 0, 0], sizes = [1, 8, 8], strides = [1, 1, 1]} : vector<4x8x8xf32> to vector<1x8x8xf32>
    %75 = vector.shape_cast %74 : vector<1x8x8xf32> to vector<8x8xf32>
    %76 = tpu.concatenate %69, %71, %73, %75 in 1 : vector<8x8xf32>, vector<8x8xf32>, vector<8x8xf32>, vector<8x8xf32> -> vector<8x32xf32>
    %77 = arith.truncf %76 : vector<8x32xf32> to vector<8x32xbf16>
    %c0_22 = arith.constant 0 : index
    %c0_23 = arith.constant 0 : index
    %78 = vector.load %arg8[%c0_22, %c0_23] : memref<32x32xbf16, #tpu.memory_space<vmem>>, vector<32x32xbf16>
    %cst_24 = arith.constant dense<0.000000e+00> : vector<8x32xf32>
    %79 = tpu.matmul %77, %78, %cst_24 {dimension_numbers = #tpu.dot_dimension_numbers<[1], [0], [0], [1], [0, 0, 1, 1], [], []>} : vector<8x32xbf16>, vector<32x32xbf16>, vector<8x32xf32> -> vector<8x32xf32>
    %c0_25 = arith.constant 0 : index
    %c0_26 = arith.constant 0 : index
    %80 = vector.load %arg9[%c0_25, %c0_26] : memref<1x32xf32, #tpu.memory_space<vmem>>, vector<1x32xf32>
    %81 = vector.broadcast %80 : vector<1x32xf32> to vector<8x32xf32>
    %82 = arith.addf %79, %81 : vector<8x32xf32>
    %83 = arith.addf %15, %82 : vector<8x32xf32>
    %84 = arith.truncf %83 : vector<8x32xf32> to vector<8x32xbf16>
    %c0_27 = arith.constant 0 : index
    %c0_28 = arith.constant 0 : index
    %85 = vector.load %arg10[%c0_27, %c0_28] : memref<32x32xbf16, #tpu.memory_space<vmem>>, vector<32x32xbf16>
    %cst_29 = arith.constant dense<0.000000e+00> : vector<8x32xf32>
    %86 = tpu.matmul %84, %85, %cst_29 {dimension_numbers = #tpu.dot_dimension_numbers<[1], [0], [0], [1], [0, 0, 1, 1], [], []>} : vector<8x32xbf16>, vector<32x32xbf16>, vector<8x32xf32> -> vector<8x32xf32>
    %c0_30 = arith.constant 0 : index
    %c0_31 = arith.constant 0 : index
    %87 = vector.load %arg11[%c0_30, %c0_31] : memref<1x32xf32, #tpu.memory_space<vmem>>, vector<1x32xf32>
    %88 = vector.broadcast %87 : vector<1x32xf32> to vector<8x32xf32>
    %89 = arith.addf %86, %88 : vector<8x32xf32>
    %cst_32 = arith.constant 0.000000e+00 : f32
    %90 = vector.broadcast %cst_32 : f32 to vector<8x32xf32>
    %91 = arith.maximumf %89, %90 : vector<8x32xf32>
    %92 = arith.truncf %91 : vector<8x32xf32> to vector<8x32xbf16>
    %c0_33 = arith.constant 0 : index
    %c0_34 = arith.constant 0 : index
    %93 = vector.load %arg12[%c0_33, %c0_34] : memref<32x32xbf16, #tpu.memory_space<vmem>>, vector<32x32xbf16>
    %cst_35 = arith.constant dense<0.000000e+00> : vector<8x32xf32>
    %94 = tpu.matmul %92, %93, %cst_35 {dimension_numbers = #tpu.dot_dimension_numbers<[1], [0], [0], [1], [0, 0, 1, 1], [], []>} : vector<8x32xbf16>, vector<32x32xbf16>, vector<8x32xf32> -> vector<8x32xf32>
    %95 = arith.truncf %94 : vector<8x32xf32> to vector<8x32xbf16>
    %96 = arith.truncf %91 : vector<8x32xf32> to vector<8x32xbf16>
    %cst_36 = arith.constant dense<0.000000e+00> : vector<8x8xf32>
    %97 = tpu.matmul %95, %96, %cst_36 {dimension_numbers = #tpu.dot_dimension_numbers<[1], [1], [0], [0], [0, 0, 1, 0], [], []>} : vector<8x32xbf16>, vector<8x32xbf16>, vector<8x8xf32> -> vector<8x8xf32>
    %c0_37 = arith.constant 0 : index
    %c0_38 = arith.constant 0 : index
    %c0_39 = arith.constant 0 : index
    %98 = vector.load %arg15[%c0_37, %c0_38, %c0_39] : memref<1x8x8xf32, #tpu.memory_space<vmem>>, vector<1x8x8xf32>
    %99 = vector.shape_cast %98 : vector<1x8x8xf32> to vector<8x8xf32>
    %100 = vector.shape_cast %97 : vector<8x8xf32> to vector<1x8x8xf32>
    tpu.vector_store %arg15[%c0_37, %c0_38, %c0_39], %100 {strides = array<i32>} : memref<1x8x8xf32, #tpu.memory_space<vmem>>, vector<1x8x8xf32>,
    %c0_40 = arith.constant 0 : index
    %c0_41 = arith.constant 0 : index
    %101 = vector.load %arg13[%c0_40, %c0_41] : memref<1x32xbf16, #tpu.memory_space<vmem>>, vector<1x32xbf16>
    %102 = arith.truncf %91 : vector<8x32xf32> to vector<8x32xbf16>
    %cst_42 = arith.constant dense<0.000000e+00> : vector<1x8xf32>
    %103 = tpu.matmul %101, %102, %cst_42 {dimension_numbers = #tpu.dot_dimension_numbers<[1], [1], [0], [0], [0, 0, 1, 0], [], []>} : vector<1x32xbf16>, vector<8x32xbf16>, vector<1x8xf32> -> vector<1x8xf32>
    %c0_43 = arith.constant 0 : index
    %c0_44 = arith.constant 0 : index
    %104 = vector.load %arg14[%c0_43, %c0_44] : memref<1x1xf32, #tpu.memory_space<vmem>>, vector<1x1xf32>
    %105 = vector.broadcast %104 : vector<1x1xf32> to vector<1x8xf32>
    %106 = arith.addf %103, %105 : vector<1x8xf32>
    %107 = arith.negf %106 : vector<1x8xf32>
    %108 = math.exp %107 : vector<1x8xf32>
    %cst_45 = arith.constant 1.000000e+00 : f32
    %109 = vector.broadcast %cst_45 : f32 to vector<1x8xf32>
    %110 = arith.addf %109, %108 : vector<1x8xf32>
    %111 = arith.divf %109, %110 : vector<1x8xf32>
    %c0_46 = arith.constant 0 : index
    %c0_47 = arith.constant 0 : index
    %c0_48 = arith.constant 0 : index
    %112 = vector.load %arg16[%c0_46, %c0_47, %c0_48] : memref<1x1x8xf32, #tpu.memory_space<vmem>>, vector<1x1x8xf32>
    %113 = vector.shape_cast %112 : vector<1x1x8xf32> to vector<1x8xf32>
    %114 = vector.shape_cast %111 : vector<1x8xf32> to vector<1x1x8xf32>
    tpu.vector_store %arg16[%c0_46, %c0_47, %c0_48], %114 {strides = array<i32>} : memref<1x1x8xf32, #tpu.memory_space<vmem>>, vector<1x1x8xf32>,
    return
  }
  func.func @transform_0(%arg0: i32) -> (i32, i32, i32) {
    %c0_i32 = arith.constant 0 : i32
    %c0_i32_0 = arith.constant 0 : i32
    %c0_i32_1 = arith.constant 0 : i32
    return %arg0, %c0_i32, %c0_i32_0 : i32, i32, i32
  }
  func.func @transform_1(%arg0: i32) -> (i32, i32, i32) {
    %c0_i32 = arith.constant 0 : i32
    %c0_i32_0 = arith.constant 0 : i32
    %c0_i32_1 = arith.constant 0 : i32
    return %arg0, %c0_i32, %c0_i32_0 : i32, i32, i32
  }
  func.func @transform_2(%arg0: i32) -> (i32, i32) {
    %c0_i32 = arith.constant 0 : i32
    %c0_i32_0 = arith.constant 0 : i32
    %c0_i32_1 = arith.constant 0 : i32
    return %c0_i32, %c0_i32_0 : i32, i32
  }
  func.func @transform_3(%arg0: i32) -> (i32, i32) {
    %c0_i32 = arith.constant 0 : i32
    %c0_i32_0 = arith.constant 0 : i32
    %c0_i32_1 = arith.constant 0 : i32
    return %c0_i32, %c0_i32_0 : i32, i32
  }
  func.func @transform_4(%arg0: i32) -> (i32, i32) {
    %c0_i32 = arith.constant 0 : i32
    %c0_i32_0 = arith.constant 0 : i32
    %c0_i32_1 = arith.constant 0 : i32
    return %c0_i32, %c0_i32_0 : i32, i32
  }
  func.func @transform_5(%arg0: i32) -> (i32, i32) {
    %c0_i32 = arith.constant 0 : i32
    %c0_i32_0 = arith.constant 0 : i32
    %c0_i32_1 = arith.constant 0 : i32
    return %c0_i32, %c0_i32_0 : i32, i32
  }
  func.func @transform_6(%arg0: i32) -> (i32, i32) {
    %c0_i32 = arith.constant 0 : i32
    %c0_i32_0 = arith.constant 0 : i32
    %c0_i32_1 = arith.constant 0 : i32
    return %c0_i32, %c0_i32_0 : i32, i32
  }
  func.func @transform_7(%arg0: i32) -> (i32, i32) {
    %c0_i32 = arith.constant 0 : i32
    %c0_i32_0 = arith.constant 0 : i32
    %c0_i32_1 = arith.constant 0 : i32
    return %c0_i32, %c0_i32_0 : i32, i32
  }
  func.func @transform_8(%arg0: i32) -> (i32, i32) {
    %c0_i32 = arith.constant 0 : i32
    %c0_i32_0 = arith.constant 0 : i32
    %c0_i32_1 = arith.constant 0 : i32
    return %c0_i32, %c0_i32_0 : i32, i32
  }
  func.func @transform_9(%arg0: i32) -> (i32, i32) {
    %c0_i32 = arith.constant 0 : i32
    %c0_i32_0 = arith.constant 0 : i32
    %c0_i32_1 = arith.constant 0 : i32
    return %c0_i32, %c0_i32_0 : i32, i32
  }
  func.func @transform_10(%arg0: i32) -> (i32, i32) {
    %c0_i32 = arith.constant 0 : i32
    %c0_i32_0 = arith.constant 0 : i32
    %c0_i32_1 = arith.constant 0 : i32
    return %c0_i32, %c0_i32_0 : i32, i32
  }
  func.func @transform_11(%arg0: i32) -> (i32, i32) {
    %c0_i32 = arith.constant 0 : i32
    %c0_i32_0 = arith.constant 0 : i32
    %c0_i32_1 = arith.constant 0 : i32
    return %c0_i32, %c0_i32_0 : i32, i32
  }
  func.func @transform_12(%arg0: i32) -> (i32, i32) {
    %c0_i32 = arith.constant 0 : i32
    %c0_i32_0 = arith.constant 0 : i32
    %c0_i32_1 = arith.constant 0 : i32
    return %c0_i32, %c0_i32_0 : i32, i32
  }
  func.func @transform_13(%arg0: i32) -> (i32, i32) {
    %c0_i32 = arith.constant 0 : i32
    %c0_i32_0 = arith.constant 0 : i32
    %c0_i32_1 = arith.constant 0 : i32
    return %c0_i32, %c0_i32_0 : i32, i32
  }
  func.func @transform_14(%arg0: i32) -> (i32, i32, i32) {
    %c0_i32 = arith.constant 0 : i32
    %c0_i32_0 = arith.constant 0 : i32
    %c0_i32_1 = arith.constant 0 : i32
    return %arg0, %c0_i32, %c0_i32_0 : i32, i32, i32
  }
  func.func @transform_15(%arg0: i32) -> (i32, i32, i32) {
    %c0_i32 = arith.constant 0 : i32
    %c0_i32_0 = arith.constant 0 : i32
    %c0_i32_1 = arith.constant 0 : i32
    return %arg0, %c0_i32, %c0_i32_0 : i32, i32, i32
  }
}

</mosaic_0001>

<llo_original>
// kernel: tpu_custom_call.1
$region0: #{tpu_custom_call.1}
  #allocation0 [shape = 'u32[]', space=smem, size = 0x4, offset = 0x4, fixed_abs, tag = 'smem constant byte address 0x4 - core index']
  #allocation1 [shape = 'u32[144,128]{1,0:T(1,128)}', space=vmem, size = 0x12000, scoped, tag = 'internal scratch']
  #allocation2 [shape = 'f32[1,1]{1,0:T(1,128)S(1)}', space=vmem, size = 0x200, scoped, tag = 'scoped memory for tpu_custom_call.1']
  %s0 = inlined_call_operand.hbm [shape: f32[2,8,16], index: 0, kind: input, shape index: {}]
  %s1 = inlined_call_operand.hbm [shape: f32[2,8,32], index: 1, kind: input, shape index: {}]
  %s2 = inlined_call_operand.hbm [shape: bf16[16,32], index: 2, kind: input, shape index: {}]
  %s3 = inlined_call_operand.hbm [shape: bf16[32,32], index: 3, kind: input, shape index: {}]
  %s4 = inlined_call_operand.vmem [shape: f32[1,32], index: 4, kind: input, shape index: {}]
  %s5 = inlined_call_operand.vmem [shape: bf16[32,96], index: 5, kind: input, shape index: {}]
  %s6 = inlined_call_operand.vmem [shape: f32[1,96], index: 6, kind: input, shape index: {}]
  %s7 = inlined_call_operand.hbm [shape: bf16[32,32], index: 7, kind: input, shape index: {}]
  %s8 = inlined_call_operand.hbm [shape: f32[1,32], index: 8, kind: input, shape index: {}]
  %s9 = inlined_call_operand.vmem [shape: bf16[32,32], index: 9, kind: input, shape index: {}]
  %s10 = inlined_call_operand.vmem [shape: f32[1,32], index: 10, kind: input, shape index: {}]
  %s11 = inlined_call_operand.hbm [shape: bf16[32,32], index: 11, kind: input, shape index: {}]
  %s12 = inlined_call_operand.vmem [shape: bf16[1,32], index: 12, kind: input, shape index: {}]
  %s13 = inlined_call_operand.<no memory space> [shape: f32[1,1], index: 13, kind: input, shape index: {}]
  %s14 = inlined_call_operand.hbm [shape: f32[2,8,8], index: 14, kind: output, shape index: {0}]
  %s15 = inlined_call_operand.hbm [shape: f32[2,1,8], index: 15, kind: output, shape index: {1}]
  %16 = xla_tuple %s14, %s15
  %s17 = sld [smem:[#allocation0]]
  $region125: #{tpu_custom_call.1} parent=0
    _
  %s19 = ssub.s32 1, %s17
  %s20 = scalar_select 0, %s19, %s17
  %v21 = vstv %s13
  %22 = vst [vmem:[#allocation2] sm:$0x1] %v21
  $region1: #{tpu_custom_call.1} parent=0
    #allocation3 [shape = 'u8[8192]{0}', space=vmem, size = 0x2000, scoped, tag = 'input window, operand 0']
    #allocation4 [shape = 's32[2]{0}', space=sflag, size = 0x8, scoped, tag = 'scoped memory for tpu_custom_call.1']
    #allocation5 [shape = 's32[2]{0}', space=sflag, size = 0x8, scoped, tag = 'scoped memory for tpu_custom_call.1']
    #allocation6 [shape = 'u8[8192]{0}', space=vmem, size = 0x2000, scoped, tag = 'input window, operand 1']
    #allocation7 [shape = 's32[2]{0}', space=sflag, size = 0x8, scoped, tag = 'scoped memory for tpu_custom_call.1']
    #allocation8 [shape = 'u8[4096]{0}', space=vmem, size = 0x1000, scoped, tag = 'input window, operand 2, single buffered']
    #allocation9 [shape = 'u8[8192]{0}', space=vmem, size = 0x2000, scoped, tag = 'input window, operand 3, single buffered']
    #allocation10 [shape = 's32[1]{0}', space=sflag, size = 0x4, scoped, tag = 'scoped memory for tpu_custom_call.1']
    #allocation11 [shape = 'u8[8192]{0}', space=vmem, size = 0x2000, scoped, tag = 'input window, operand 7, single buffered']
    #allocation12 [shape = 'u8[512]{0}', space=vmem, size = 0x400, scoped, tag = 'input window, operand 8, single buffered']
    #allocation13 [shape = 's32[1]{0}', space=sflag, size = 0x4, scoped, tag = 'scoped memory for tpu_custom_call.1']
    #allocation14 [shape = 'u8[8192]{0}', space=vmem, size = 0x2000, scoped, tag = 'input window, operand 11, single buffered']
    #allocation15 [shape = 'u8[8192]{0}', space=vmem, size = 0x2000, scoped, tag = 'output window, operand 0']
    #allocation16 [shape = 'u8[1024]{0}', space=vmem, size = 0x400, scoped, tag = 'output window, operand 1']
    #allocation17 [shape = 's32[2]{0}', space=sflag, size = 0x8, scoped, tag = 'scoped memory for tpu_custom_call.1']
    %23 = vsyncpa [#allocation4], 0
    %s24 = scalar_lea.sflag [#allocation4], 1
    %25 = vsyncpa %s24, 0
    %26 = vsyncpa [#allocation7], 0
    %s27 = scalar_lea.sflag [#allocation7], 1
    %28 = vsyncpa %s27, 0
    %29 = vsyncpa [#allocation10], 0
    %30 = vsyncpa [#allocation13], 0
    %31 = vsyncpa [#allocation5], 0
    %s32 = scalar_lea.sflag [#allocation5], 1
    %33 = vsyncpa %s32, 0
    %34 = vsyncpa [#allocation17], 0
    %s35 = scalar_lea.sflag [#allocation17], 1
    %36 = vsyncpa %s35, 0
    loop: start=0, step=1, limit=4
    $region2: #{tpu_custom_call.1} parent=1 // loop_pre_header
      _
    $region3: #{tpu_custom_call.1} parent=1 // loop_header
      %s38 = sphi 0, %s42
      %p39 = scmp.ge.s32.totalorder %s38, 4
      %s48 = sphi 0, %s50
      %s51 = sphi 0, %s48
      %s52 = sphi 0, %s51
      %s68 = sphi 0, %s52
      %s74 = sphi 0, %s76
      %s77 = sphi 0, %s74
      %s78 = sphi 0, %s77
      %s94 = sphi 0, %s78
      %s98 = sphi 0, %s98
      %s100 = sphi 0, %s98
      %s101 = sphi 0, %s100
      %s115 = sphi 0, %s101
      %s119 = sphi 0, %s119
      %s121 = sphi 0, %s119
      %s122 = sphi 0, %s121
      %s136 = sphi 0, %s122
      %s140 = sphi 0, %s140
      %s142 = sphi 0, %s140
      %s143 = sphi 0, %s142
      %s157 = sphi 0, %s143
      %s161 = sphi 0, %s161
      %s163 = sphi 0, %s161
      %s164 = sphi 0, %s163
      %s178 = sphi 0, %s164
      %s182 = sphi 0, %s182
      %s184 = sphi 0, %s182
      %s185 = sphi 0, %s184
      %s199 = sphi 0, %s185
      %s203 = sphi 0, %s203
      %s205 = sphi 0, %s203
      %s206 = sphi 0, %s205
      %s220 = sphi 0, %s206
      %s224 = sphi 0, %s224
      %s226 = sphi 0, %s224
      %s227 = sphi 0, %s226
      %s241 = sphi 0, %s227
      %s245 = sphi 0, %s245
      %s247 = sphi 0, %s245
      %s248 = sphi 0, %s247
      %s262 = sphi 0, %s248
      %s266 = sphi 0, %s266
      %s268 = sphi 0, %s266
      %s269 = sphi 0, %s268
      %s283 = sphi 0, %s269
      %s287 = sphi 0, %s287
      %s289 = sphi 0, %s287
      %s290 = sphi 0, %s289
      %s304 = sphi 0, %s290
      %s308 = sphi 0, %s308
      %s310 = sphi 0, %s308
      %s311 = sphi 0, %s310
      %s325 = sphi 0, %s311
      %s329 = sphi 0, %s329
      %s331 = sphi 0, %s329
      %s332 = sphi 0, %s331
      %s346 = sphi 0, %s332
      %s352 = sphi 0, %s354
      %s355 = sphi 0, %s352
      %s356 = sphi 0, %s355
      %s372 = sphi 0, %s356
      %s378 = sphi 0, %s380
      %s381 = sphi 0, %s378
      %s382 = sphi 0, %s381
      %s398 = sphi 0, %s382
    $region4: #{tpu_custom_call.1} parent=1 // loop_header_branch
      %41 = sbr.rel (%p39) target = $region8
    $region5: #{tpu_custom_call.1} parent=1 // loop_body
      %s43 = ssub.s32 %s38, 1
      %s44 = ssub.s32 %s38, 2
      %s45 = sadd.s32 %s38, 1
      %s46 = ssub.s32 %s38, %s45
      %p47 = scmp.eq.s32.totalorder %s46, 0
      %s49 = sadd.s32 %s48, 1
      %s50 = scalar_select %p47, %s48, %s49
      %p53 = pneg %p47
      %p54 = scmp.eq.s32.totalorder %s38, 1
      %p55 = por %p53, %p54
      %p56 = scmp.ne.s32.totalorder %s48, %s51
      %p57 = scmp.eq.s32.totalorder %s38, 0
      %p58 = por %p56, %p57
      %p59 = scmp.ne.s32.totalorder %s48, %s51
      %p60 = scmp.eq.s32.totalorder %s43, 1
      %p61 = por %p59, %p60
      %p62 = scmp.ne.s32.totalorder %s51, %s52
      %p63 = scmp.eq.s32.totalorder %s43, 0
      %p64 = por %p62, %p63
      %p65 = scmp.ne.s32.totalorder %s51, %s52
      %p66 = scmp.eq.s32.totalorder %s44, 1
      %p67 = por %p65, %p66
      %p69 = scmp.ne.s32.totalorder %s52, %s68
      %p70 = scmp.eq.s32.totalorder %s44, 0
      %p71 = por %p69, %p70
      %s72 = ssub.s32 %s38, %s45
      %p73 = scmp.eq.s32.totalorder %s72, 0
      %s75 = sadd.s32 %s74, 1
      %s76 = scalar_select %p73, %s74, %s75
      %p79 = pneg %p73
      %p80 = scmp.eq.s32.totalorder %s38, 1
      %p81 = por %p79, %p80
      %p82 = scmp.ne.s32.totalorder %s74, %s77
      %p83 = scmp.eq.s32.totalorder %s38, 0
      %p84 = por %p82, %p83
      %p85 = scmp.ne.s32.totalorder %s74, %s77
      %p86 = scmp.eq.s32.totalorder %s43, 1
      %p87 = por %p85, %p86
      %p88 = scmp.ne.s32.totalorder %s77, %s78
      %p89 = scmp.eq.s32.totalorder %s43, 0
      %p90 = por %p88, %p89
      %p91 = scmp.ne.s32.totalorder %s77, %s78
      %p92 = scmp.eq.s32.totalorder %s44, 1
      %p93 = por %p91, %p92
      %p95 = scmp.ne.s32.totalorder %s78, %s94
      %p96 = scmp.eq.s32.totalorder %s44, 0
      %p97 = por %p95, %p96
      %s99 = sadd.s32 %s98, 1
      %p102 = scmp.eq.s32.totalorder %s38, 1
      %p103 = scmp.ne.s32.totalorder %s98, %s100
      %p104 = scmp.eq.s32.totalorder %s38, 0
      %p105 = por %p103, %p104
      %p106 = scmp.ne.s32.totalorder %s98, %s100
      %p107 = scmp.eq.s32.totalorder %s43, 1
      %p108 = por %p106, %p107
      %p109 = scmp.ne.s32.totalorder %s100, %s101
      %p110 = scmp.eq.s32.totalorder %s43, 0
      %p111 = por %p109, %p110
      %p112 = scmp.ne.s32.totalorder %s100, %s101
      %p113 = scmp.eq.s32.totalorder %s44, 1
      %p114 = por %p112, %p113
      %p116 = scmp.ne.s32.totalorder %s101, %s115
      %p117 = scmp.eq.s32.totalorder %s44, 0
      %p118 = por %p116, %p117
      %s120 = sadd.s32 %s119, 1
      %p123 = scmp.eq.s32.totalorder %s38, 1
      %p124 = scmp.ne.s32.totalorder %s119, %s121
      %p125 = scmp.eq.s32.totalorder %s38, 0
      %p126 = por %p124, %p125
      %p127 = scmp.ne.s32.totalorder %s119, %s121
      %p128 = scmp.eq.s32.totalorder %s43, 1
      %p129 = por %p127, %p128
      %p130 = scmp.ne.s32.totalorder %s121, %s122
      %p131 = scmp.eq.s32.totalorder %s43, 0
      %p132 = por %p130, %p131
      %p133 = scmp.ne.s32.totalorder %s121, %s122
      %p134 = scmp.eq.s32.totalorder %s44, 1
      %p135 = por %p133, %p134
      %p137 = scmp.ne.s32.totalorder %s122, %s136
      %p138 = scmp.eq.s32.totalorder %s44, 0
      %p139 = por %p137, %p138
      %s141 = sadd.s32 %s140, 1
      %p144 = scmp.eq.s32.totalorder %s38, 1
      %p145 = scmp.ne.s32.totalorder %s140, %s142
      %p146 = scmp.eq.s32.totalorder %s38, 0
      %p147 = por %p145, %p146
      %p148 = scmp.ne.s32.totalorder %s140, %s142
      %p149 = scmp.eq.s32.totalorder %s43, 1
      %p150 = por %p148, %p149
      %p151 = scmp.ne.s32.totalorder %s142, %s143
      %p152 = scmp.eq.s32.totalorder %s43, 0
      %p153 = por %p151, %p152
      %p154 = scmp.ne.s32.totalorder %s142, %s143
      %p155 = scmp.eq.s32.totalorder %s44, 1
      %p156 = por %p154, %p155
      %p158 = scmp.ne.s32.totalorder %s143, %s157
      %p159 = scmp.eq.s32.totalorder %s44, 0
      %p160 = por %p158, %p159
      %s162 = sadd.s32 %s161, 1
      %p165 = scmp.eq.s32.totalorder %s38, 1
      %p166 = scmp.ne.s32.totalorder %s161, %s163
      %p167 = scmp.eq.s32.totalorder %s38, 0
      %p168 = por %p166, %p167
      %p169 = scmp.ne.s32.totalorder %s161, %s163
      %p170 = scmp.eq.s32.totalorder %s43, 1
      %p171 = por %p169, %p170
      %p172 = scmp.ne.s32.totalorder %s163, %s164
      %p173 = scmp.eq.s32.totalorder %s43, 0
      %p174 = por %p172, %p173
      %p175 = scmp.ne.s32.totalorder %s163, %s164
      %p176 = scmp.eq.s32.totalorder %s44, 1
      %p177 = por %p175, %p176
      %p179 = scmp.ne.s32.totalorder %s164, %s178
      %p180 = scmp.eq.s32.totalorder %s44, 0
      %p181 = por %p179, %p180
      %s183 = sadd.s32 %s182, 1
      %p186 = scmp.eq.s32.totalorder %s38, 1
      %p187 = scmp.ne.s32.totalorder %s182, %s184
      %p188 = scmp.eq.s32.totalorder %s38, 0
      %p189 = por %p187, %p188
      %p190 = scmp.ne.s32.totalorder %s182, %s184
      %p191 = scmp.eq.s32.totalorder %s43, 1
      %p192 = por %p190, %p191
      %p193 = scmp.ne.s32.totalorder %s184, %s185
      %p194 = scmp.eq.s32.totalorder %s43, 0
      %p195 = por %p193, %p194
      %p196 = scmp.ne.s32.totalorder %s184, %s185
      %p197 = scmp.eq.s32.totalorder %s44, 1
      %p198 = por %p196, %p197
      %p200 = scmp.ne.s32.totalorder %s185, %s199
      %p201 = scmp.eq.s32.totalorder %s44, 0
      %p202 = por %p200, %p201
      %s204 = sadd.s32 %s203, 1
      %p207 = scmp.eq.s32.totalorder %s38, 1
      %p208 = scmp.ne.s32.totalorder %s203, %s205
      %p209 = scmp.eq.s32.totalorder %s38, 0
      %p210 = por %p208, %p209
      %p211 = scmp.ne.s32.totalorder %s203, %s205
      %p212 = scmp.eq.s32.totalorder %s43, 1
      %p213 = por %p211, %p212
      %p214 = scmp.ne.s32.totalorder %s205, %s206
      %p215 = scmp.eq.s32.totalorder %s43, 0
      %p216 = por %p214, %p215
      %p217 = scmp.ne.s32.totalorder %s205, %s206
      %p218 = scmp.eq.s32.totalorder %s44, 1
      %p219 = por %p217, %p218
      %p221 = scmp.ne.s32.totalorder %s206, %s220
      %p222 = scmp.eq.s32.totalorder %s44, 0
      %p223 = por %p221, %p222
      %s225 = sadd.s32 %s224, 1
      %p228 = scmp.eq.s32.totalorder %s38, 1
      %p229 = scmp.ne.s32.totalorder %s224, %s226
      %p230 = scmp.eq.s32.totalorder %s38, 0
      %p231 = por %p229, %p230
      %p232 = scmp.ne.s32.totalorder %s224, %s226
      %p233 = scmp.eq.s32.totalorder %s43, 1
      %p234 = por %p232, %p233
      %p235 = scmp.ne.s32.totalorder %s226, %s227
      %p236 = scmp.eq.s32.totalorder %s43, 0
      %p237 = por %p235, %p236
      %p238 = scmp.ne.s32.totalorder %s226, %s227
      %p239 = scmp.eq.s32.totalorder %s44, 1
      %p240 = por %p238, %p239
      %p242 = scmp.ne.s32.totalorder %s227, %s241
      %p243 = scmp.eq.s32.totalorder %s44, 0
      %p244 = por %p242, %p243
      %s246 = sadd.s32 %s245, 1
      %p249 = scmp.eq.s32.totalorder %s38, 1
      %p250 = scmp.ne.s32.totalorder %s245, %s247
      %p251 = scmp.eq.s32.totalorder %s38, 0
      %p252 = por %p250, %p251
      %p253 = scmp.ne.s32.totalorder %s245, %s247
      %p254 = scmp.eq.s32.totalorder %s43, 1
      %p255 = por %p253, %p254
      %p256 = scmp.ne.s32.totalorder %s247, %s248
      %p257 = scmp.eq.s32.totalorder %s43, 0
      %p258 = por %p256, %p257
      %p259 = scmp.ne.s32.totalorder %s247, %s248
      %p260 = scmp.eq.s32.totalorder %s44, 1
      %p261 = por %p259, %p260
      %p263 = scmp.ne.s32.totalorder %s248, %s262
      %p264 = scmp.eq.s32.totalorder %s44, 0
      %p265 = por %p263, %p264
      %s267 = sadd.s32 %s266, 1
      %p270 = scmp.eq.s32.totalorder %s38, 1
      %p271 = scmp.ne.s32.totalorder %s266, %s268
      %p272 = scmp.eq.s32.totalorder %s38, 0
      %p273 = por %p271, %p272
      %p274 = scmp.ne.s32.totalorder %s266, %s268
      %p275 = scmp.eq.s32.totalorder %s43, 1
      %p276 = por %p274, %p275
      %p277 = scmp.ne.s32.totalorder %s268, %s269
      %p278 = scmp.eq.s32.totalorder %s43, 0
      %p279 = por %p277, %p278
      %p280 = scmp.ne.s32.totalorder %s268, %s269
      %p281 = scmp.eq.s32.totalorder %s44, 1
      %p282 = por %p280, %p281
      %p284 = scmp.ne.s32.totalorder %s269, %s283
      %p285 = scmp.eq.s32.totalorder %s44, 0
      %p286 = por %p284, %p285
      %s288 = sadd.s32 %s287, 1
      %p291 = scmp.eq.s32.totalorder %s38, 1
      %p292 = scmp.ne.s32.totalorder %s287, %s289
      %p293 = scmp.eq.s32.totalorder %s38, 0
      %p294 = por %p292, %p293
      %p295 = scmp.ne.s32.totalorder %s287, %s289
      %p296 = scmp.eq.s32.totalorder %s43, 1
      %p297 = por %p295, %p296
      %p298 = scmp.ne.s32.totalorder %s289, %s290
      %p299 = scmp.eq.s32.totalorder %s43, 0
      %p300 = por %p298, %p299
      %p301 = scmp.ne.s32.totalorder %s289, %s290
      %p302 = scmp.eq.s32.totalorder %s44, 1
      %p303 = por %p301, %p302
      %p305 = scmp.ne.s32.totalorder %s290, %s304
      %p306 = scmp.eq.s32.totalorder %s44, 0
      %p307 = por %p305, %p306
      %s309 = sadd.s32 %s308, 1
      %p312 = scmp.eq.s32.totalorder %s38, 1
      %p313 = scmp.ne.s32.totalorder %s308, %s310
      %p314 = scmp.eq.s32.totalorder %s38, 0
      %p315 = por %p313, %p314
      %p316 = scmp.ne.s32.totalorder %s308, %s310
      %p317 = scmp.eq.s32.totalorder %s43, 1
      %p318 = por %p316, %p317
      %p319 = scmp.ne.s32.totalorder %s310, %s311
      %p320 = scmp.eq.s32.totalorder %s43, 0
      %p321 = por %p319, %p320
      %p322 = scmp.ne.s32.totalorder %s310, %s311
      %p323 = scmp.eq.s32.totalorder %s44, 1
      %p324 = por %p322, %p323
      %p326 = scmp.ne.s32.totalorder %s311, %s325
      %p327 = scmp.eq.s32.totalorder %s44, 0
      %p328 = por %p326, %p327
      %s330 = sadd.s32 %s329, 1
      %p333 = scmp.eq.s32.totalorder %s38, 1
      %p334 = scmp.ne.s32.totalorder %s329, %s331
      %p335 = scmp.eq.s32.totalorder %s38, 0
      %p336 = por %p334, %p335
      %p337 = scmp.ne.s32.totalorder %s329, %s331
      %p338 = scmp.eq.s32.totalorder %s43, 1
      %p339 = por %p337, %p338
      %p340 = scmp.ne.s32.totalorder %s331, %s332
      %p341 = scmp.eq.s32.totalorder %s43, 0
      %p342 = por %p340, %p341
      %p343 = scmp.ne.s32.totalorder %s331, %s332
      %p344 = scmp.eq.s32.totalorder %s44, 1
      %p345 = por %p343, %p344
      %p347 = scmp.ne.s32.totalorder %s332, %s346
      %p348 = scmp.eq.s32.totalorder %s44, 0
      %p349 = por %p347, %p348
      %s350 = ssub.s32 %s38, %s45
      %p351 = scmp.eq.s32.totalorder %s350, 0
      %s353 = sadd.s32 %s352, 1
      %s354 = scalar_select %p351, %s352, %s353
      %p357 = pneg %p351
      %p358 = scmp.eq.s32.totalorder %s38, 1
      %p359 = por %p357, %p358
      %p360 = scmp.ne.s32.totalorder %s352, %s355
      %p361 = scmp.eq.s32.totalorder %s38, 0
      %p362 = por %p360, %p361
      %p363 = scmp.ne.s32.totalorder %s352, %s355
      %p364 = scmp.eq.s32.totalorder %s43, 1
      %p365 = por %p363, %p364
      %p366 = scmp.ne.s32.totalorder %s355, %s356
      %p367 = scmp.eq.s32.totalorder %s43, 0
      %p368 = por %p366, %p367
      %p369 = scmp.ne.s32.totalorder %s355, %s356
      %p370 = scmp.eq.s32.totalorder %s44, 1
      %p371 = por %p369, %p370
      %p373 = scmp.ne.s32.totalorder %s356, %s372
      %p374 = scmp.eq.s32.totalorder %s44, 0
      %p375 = por %p373, %p374
      %s376 = ssub.s32 %s38, %s45
      %p377 = scmp.eq.s32.totalorder %s376, 0
      %s379 = sadd.s32 %s378, 1
      %s380 = scalar_select %p377, %s378, %s379
      %p383 = pneg %p377
      %p384 = scmp.eq.s32.totalorder %s38, 1
      %p385 = por %p383, %p384
      %p386 = scmp.ne.s32.totalorder %s378, %s381
      %p387 = scmp.eq.s32.totalorder %s38, 0
      %p388 = por %p386, %p387
      %p389 = scmp.ne.s32.totalorder %s378, %s381
      %p390 = scmp.eq.s32.totalorder %s43, 1
      %p391 = por %p389, %p390
      %p392 = scmp.ne.s32.totalorder %s381, %s382
      %p393 = scmp.eq.s32.totalorder %s43, 0
      %p394 = por %p392, %p393
      %p395 = scmp.ne.s32.totalorder %s381, %s382
      %p396 = scmp.eq.s32.totalorder %s44, 1
      %p397 = por %p395, %p396
      %p399 = scmp.ne.s32.totalorder %s382, %s398
      %p400 = scmp.eq.s32.totalorder %s44, 0
      %p401 = por %p399, %p400
      %p402 = scmp.le.s32.totalorder 1, %s38
      %p403 = scmp.lt.s32.totalorder %s38, 3
      %p404 = pnand %p402, %p403
      %p405 = pneg %p404
      // Predicated region
      $region9: #{tpu_custom_call.1} parent=5 // pred_check
        _
      $region10: #{tpu_custom_call.1} parent=5 // pred_check_branch
        %407 = sbr.rel (%p404) target = $region12
      $region11: #{tpu_custom_call.1} parent=5 // pred_region
        %s408 = ssub.s32 %s38, 1
        // Predicated region
        $region13: #{tpu_custom_call.1} parent=11 // pred_check
          %p409 = pneg %p111
        $region14: #{tpu_custom_call.1} parent=11 // pred_check_branch
          %411 = sbr.rel (%p409) target = $region16
        $region15: #{tpu_custom_call.1} parent=11 // pred_region
          %s413 = ssub.s32 128, 128
          %414 = vsyncadd [#allocation7], %s413
          %s415 = sshll.u32 [#allocation8], 4
          %s416 = int_to_ptr.vmem [resolvable:$true] %s415
          %421 = dma.hbm_to_vmem [thread:$0]  %s2, 128, %s416, [#allocation7], 64, 64, 4
        $region16: #{tpu_custom_call.1} parent=11 // pred_fallthru
          _
        // Predicated region
        $region17: #{tpu_custom_call.1} parent=11 // pred_check
          %p422 = pneg %p132
        $region18: #{tpu_custom_call.1} parent=11 // pred_check_branch
          %424 = sbr.rel (%p422) target = $region20
        $region19: #{tpu_custom_call.1} parent=11 // pred_region
          %s426 = ssub.s32 256, 256
          %427 = vsyncadd [#allocation10], %s426
          %s428 = sshll.u32 [#allocation9], 4
          %s429 = int_to_ptr.vmem [resolvable:$true] %s428
          %434 = dma.hbm_to_vmem [thread:$0]  %s3, 256, %s429, [#allocation10], 64, 64, 4
        $region20: #{tpu_custom_call.1} parent=11 // pred_fallthru
          _
        // Predicated region
        $region21: #{tpu_custom_call.1} parent=11 // pred_check
          %p435 = pneg %p153
        $region22: #{tpu_custom_call.1} parent=11 // pred_check_branch
          %437 = sbr.rel (%p435) target = $region24
        $region23: #{tpu_custom_call.1} parent=11 // pred_region
          _
        $region24: #{tpu_custom_call.1} parent=11 // pred_fallthru
          _
        // Predicated region
        $region25: #{tpu_custom_call.1} parent=11 // pred_check
          %p438 = pneg %p174
        $region26: #{tpu_custom_call.1} parent=11 // pred_check_branch
          %440 = sbr.rel (%p438) target = $region28
        $region27: #{tpu_custom_call.1} parent=11 // pred_region
          _
        $region28: #{tpu_custom_call.1} parent=11 // pred_fallthru
          _
        // Predicated region
        $region29: #{tpu_custom_call.1} parent=11 // pred_check
          %p441 = pneg %p195
        $region30: #{tpu_custom_call.1} parent=11 // pred_check_branch
          %443 = sbr.rel (%p441) target = $region32
        $region31: #{tpu_custom_call.1} parent=11 // pred_region
          _
        $region32: #{tpu_custom_call.1} parent=11 // pred_fallthru
          _
        // Predicated region
        $region33: #{tpu_custom_call.1} parent=11 // pred_check
          %p444 = pneg %p216
        $region34: #{tpu_custom_call.1} parent=11 // pred_check_branch
          %446 = sbr.rel (%p444) target = $region36
        $region35: #{tpu_custom_call.1} parent=11 // pred_region
          %s448 = ssub.s32 256, 256
          %449 = vsyncadd [#allocation10], %s448
          %s450 = sshll.u32 [#allocation11], 4
          %s451 = int_to_ptr.vmem [resolvable:$true] %s450
          %456 = dma.hbm_to_vmem [thread:$0]  %s7, 256, %s451, [#allocation10], 64, 64, 4
        $region36: #{tpu_custom_call.1} parent=11 // pred_fallthru
          _
        // Predicated region
        $region37: #{tpu_custom_call.1} parent=11 // pred_check
          %p457 = pneg %p237
        $region38: #{tpu_custom_call.1} parent=11 // pred_check_branch
          %459 = sbr.rel (%p457) target = $region40
        $region39: #{tpu_custom_call.1} parent=11 // pred_region
          %s461 = ssub.s32 16, 16
          %462 = vsyncadd [#allocation13], %s461
          %s464 = sshll.u32 [#allocation12], 4
          %s465 = int_to_ptr.vmem [resolvable:$true] %s464
          %467 = dma.hbm_to_vmem [thread:$0]  %s8, 16, %s465, [#allocation13]
        $region40: #{tpu_custom_call.1} parent=11 // pred_fallthru
          _
        // Predicated region
        $region41: #{tpu_custom_call.1} parent=11 // pred_check
          %p468 = pneg %p258
        $region42: #{tpu_custom_call.1} parent=11 // pred_check_branch
          %470 = sbr.rel (%p468) target = $region44
        $region43: #{tpu_custom_call.1} parent=11 // pred_region
          _
        $region44: #{tpu_custom_call.1} parent=11 // pred_fallthru
          _
        // Predicated region
        $region45: #{tpu_custom_call.1} parent=11 // pred_check
          %p471 = pneg %p279
        $region46: #{tpu_custom_call.1} parent=11 // pred_check_branch
          %473 = sbr.rel (%p471) target = $region48
        $region47: #{tpu_custom_call.1} parent=11 // pred_region
          _
        $region48: #{tpu_custom_call.1} parent=11 // pred_fallthru
          _
        // Predicated region
        $region49: #{tpu_custom_call.1} parent=11 // pred_check
          %p474 = pneg %p300
        $region50: #{tpu_custom_call.1} parent=11 // pred_check_branch
          %476 = sbr.rel (%p474) target = $region52
        $region51: #{tpu_custom_call.1} parent=11 // pred_region
          %s478 = ssub.s32 256, 256
          %479 = vsyncadd [#allocation13], %s478
          %s480 = sshll.u32 [#allocation14], 4
          %s481 = int_to_ptr.vmem [resolvable:$true] %s480
          %486 = dma.hbm_to_vmem [thread:$0]  %s11, 256, %s481, [#allocation13], 64, 64, 4
        $region52: #{tpu_custom_call.1} parent=11 // pred_fallthru
          _
        // Predicated region
        $region53: #{tpu_custom_call.1} parent=11 // pred_check
          %p487 = pneg %p321
        $region54: #{tpu_custom_call.1} parent=11 // pred_check_branch
          %489 = sbr.rel (%p487) target = $region56
        $region55: #{tpu_custom_call.1} parent=11 // pred_region
          _
        $region56: #{tpu_custom_call.1} parent=11 // pred_fallthru
          _
        // Predicated region
        $region57: #{tpu_custom_call.1} parent=11 // pred_check
          %p490 = pneg %p342
        $region58: #{tpu_custom_call.1} parent=11 // pred_check_branch
          %492 = sbr.rel (%p490) target = $region60
        $region59: #{tpu_custom_call.1} parent=11 // pred_region
          _
        $region60: #{tpu_custom_call.1} parent=11 // pred_fallthru
          _
      $region12: #{tpu_custom_call.1} parent=5 // pred_fallthru
        _
      %p493 = scmp.lt.s32.totalorder %s38, 2
      // Predicated region
      $region61: #{tpu_custom_call.1} parent=5 // pred_check
        %p494 = pneg %p493
      $region62: #{tpu_custom_call.1} parent=5 // pred_check_branch
        %496 = sbr.rel (%p494) target = $region64
      $region63: #{tpu_custom_call.1} parent=5 // pred_region
        // Predicated region
        $region65: #{tpu_custom_call.1} parent=63 // pred_check
          %p497 = pneg %p58
        $region66: #{tpu_custom_call.1} parent=63 // pred_check_branch
          %499 = sbr.rel (%p497) target = $region68
        $region67: #{tpu_custom_call.1} parent=63 // pred_region
          %s500 = sand.u32 %s48, 1
          %s501 = scalar_lea.sflag [#allocation4], %s500
          %s502 = sand.u32 %s48, 1
          %s503 = smul.addr %s502, 8
          %s504 = scalar_lea.vmem [#allocation3], %s503
          %s506 = ssub.s32 128, 128
          %507 = vsyncadd %s501, %s506
          %s508 = smul.addr %s38, 128
          %s509 = scalar_lea.hbm %s0, %s508
          %s511 = sshll.u32 %s504, 4
          %s512 = int_to_ptr.vmem [resolvable:$true] %s511
          %514 = dma.hbm_to_vmem [thread:$0]  %s509, 128, %s512, %s501
        $region68: #{tpu_custom_call.1} parent=63 // pred_fallthru
          _
        // Predicated region
        $region69: #{tpu_custom_call.1} parent=63 // pred_check
          %p515 = pneg %p84
        $region70: #{tpu_custom_call.1} parent=63 // pred_check_branch
          %517 = sbr.rel (%p515) target = $region72
        $region71: #{tpu_custom_call.1} parent=63 // pred_region
          %s518 = sand.u32 %s38, 1
          %s519 = scalar_lea.sflag [#allocation7], %s518
          %s520 = sand.u32 %s74, 1
          %s521 = smul.addr %s520, 8
          %s522 = scalar_lea.vmem [#allocation6], %s521
          %s524 = ssub.s32 128, 128
          %525 = vsyncadd %s519, %s524
          %s526 = smul.addr %s38, 128
          %s527 = scalar_lea.hbm %s1, %s526
          %s529 = sshll.u32 %s522, 4
          %s530 = int_to_ptr.vmem [resolvable:$true] %s529
          %532 = dma.hbm_to_vmem [thread:$0]  %s527, 128, %s530, %s519
        $region72: #{tpu_custom_call.1} parent=63 // pred_fallthru
          _
      $region64: #{tpu_custom_call.1} parent=5 // pred_fallthru
        _
      %p533 = scmp.le.s32.totalorder 1, %s38
      %p534 = scmp.lt.s32.totalorder %s38, 3
      %p535 = pnand %p533, %p534
      %p536 = pneg %p535
      // Predicated region
      $region73: #{tpu_custom_call.1} parent=5 // pred_check
        _
      $region74: #{tpu_custom_call.1} parent=5 // pred_check_branch
        %538 = sbr.rel (%p535) target = $region76
      $region75: #{tpu_custom_call.1} parent=5 // pred_region
        %s539 = ssub.s32 %s38, 1
        %s540 = sand.u32 %s51, 1
        %s541 = scalar_lea.sflag [#allocation4], %s540
        %s542 = sand.u32 %s51, 1
        %s543 = smul.addr %s542, 8
        %s544 = scalar_lea.vmem [#allocation3], %s543
        // Predicated region
        $region77: #{tpu_custom_call.1} parent=75 // pred_check
          %p545 = pneg %p64
        $region78: #{tpu_custom_call.1} parent=75 // pred_check_branch
          %547 = sbr.rel (%p545) target = $region80
        $region79: #{tpu_custom_call.1} parent=75 // pred_region
          %548 = dma.done %s541, 128
        $region80: #{tpu_custom_call.1} parent=75 // pred_fallthru
          _
        %s549 = sand.u32 %s43, 1
        %s550 = scalar_lea.sflag [#allocation7], %s549
        %s551 = sand.u32 %s77, 1
        %s552 = smul.addr %s551, 8
        %s553 = scalar_lea.vmem [#allocation6], %s552
        // Predicated region
        $region81: #{tpu_custom_call.1} parent=75 // pred_check
          %p554 = pneg %p90
        $region82: #{tpu_custom_call.1} parent=75 // pred_check_branch
          %556 = sbr.rel (%p554) target = $region84
        $region83: #{tpu_custom_call.1} parent=75 // pred_region
          %557 = dma.done %s550, 128
        $region84: #{tpu_custom_call.1} parent=75 // pred_fallthru
          _
        // Predicated region
        $region85: #{tpu_custom_call.1} parent=75 // pred_check
          %p558 = pneg %p111
        $region86: #{tpu_custom_call.1} parent=75 // pred_check_branch
          %560 = sbr.rel (%p558) target = $region88
        $region87: #{tpu_custom_call.1} parent=75 // pred_region
          %561 = dma.done [#allocation7], 128
        $region88: #{tpu_custom_call.1} parent=75 // pred_fallthru
          _
        // Predicated region
        $region89: #{tpu_custom_call.1} parent=75 // pred_check
          %p562 = pneg %p132
        $region90: #{tpu_custom_call.1} parent=75 // pred_check_branch
          %564 = sbr.rel (%p562) target = $region92
        $region91: #{tpu_custom_call.1} parent=75 // pred_region
          %565 = dma.done [#allocation10], 256
        $region92: #{tpu_custom_call.1} parent=75 // pred_fallthru
          _
        // Predicated region
        $region93: #{tpu_custom_call.1} parent=75 // pred_check
          %p566 = pneg %p216
        $region94: #{tpu_custom_call.1} parent=75 // pred_check_branch
          %568 = sbr.rel (%p566) target = $region96
        $region95: #{tpu_custom_call.1} parent=75 // pred_region
          %569 = dma.done [#allocation10], 256
        $region96: #{tpu_custom_call.1} parent=75 // pred_fallthru
          _
        // Predicated region
        $region97: #{tpu_custom_call.1} parent=75 // pred_check
          %p570 = pneg %p237
        $region98: #{tpu_custom_call.1} parent=75 // pred_check_branch
          %572 = sbr.rel (%p570) target = $region100
        $region99: #{tpu_custom_call.1} parent=75 // pred_region
          %573 = dma.done [#allocation13], 16
        $region100: #{tpu_custom_call.1} parent=75 // pred_fallthru
          _
        // Predicated region
        $region101: #{tpu_custom_call.1} parent=75 // pred_check
          %p574 = pneg %p300
        $region102: #{tpu_custom_call.1} parent=75 // pred_check_branch
          %576 = sbr.rel (%p574) target = $region104
        $region103: #{tpu_custom_call.1} parent=75 // pred_region
          %577 = dma.done [#allocation13], 256
        $region104: #{tpu_custom_call.1} parent=75 // pred_fallthru
          _
        %s578 = sand.u32 %s51, 1
        %s579 = scalar_lea.sflag [#allocation4], %s578
        %s580 = sand.u32 %s51, 1
        %s581 = smul.addr %s580, 8
        %s582 = scalar_lea.vmem [#allocation3], %s581
        %p583 = pneg %p64
        %p584 = pneg %p61
        %s585 = sand.u32 %s43, 1
        %s586 = scalar_lea.sflag [#allocation7], %s585
        %s587 = sand.u32 %s77, 1
        %s588 = smul.addr %s587, 8
        %s589 = scalar_lea.vmem [#allocation6], %s588
        %p590 = pneg %p90
        %p591 = pneg %p87
        %p592 = pneg %p111
        %p593 = pneg %p108
        %p594 = pneg %p132
        %p595 = pneg %p129
        %p596 = pneg %p153
        %p597 = pneg %p150
        %p598 = pneg %p174
        %p599 = pneg %p171
        %p600 = pneg %p195
        %p601 = pneg %p192
        %p602 = pneg %p216
        %p603 = pneg %p213
        %p604 = pneg %p237
        %p605 = pneg %p234
        %p606 = pneg %p258
        %p607 = pneg %p255
        %p608 = pneg %p279
        %p609 = pneg %p276
        %p610 = pneg %p300
        %p611 = pneg %p297
        %p612 = pneg %p321
        %p613 = pneg %p318
        %p614 = pneg %p342
        %p615 = pneg %p339
        %p616 = pneg %p368
        %p617 = pneg %p365
        %s618 = sand.u32 %s355, 1
        %s619 = scalar_lea.sflag [#allocation5], %s618
        %s620 = sand.u32 %s355, 1
        %s621 = smul.addr %s620, 8
        %s622 = scalar_lea.vmem [#allocation15], %s621
        %p623 = pneg %p394
        %p624 = pneg %p391
        %s625 = sand.u32 %s381, 1
        %s626 = scalar_lea.sflag [#allocation17], %s625
        %s627 = sand.u32 %s381, 1
        %s628 = scalar_lea.vmem [#allocation16], %s627
        %v630 = vld [vmem:[%s544] sm:$0xff]
        %v631 = vld [vmem:[%s553] sm:$0xff]
        %v632 = vpack.c.bf16 %v630, %v630
        %v633 = vld [vmem:[#allocation8] sm:$0xf]
        %v634 = vld [vmem:[#allocation8 + $0x4] sm:$0xf]
        %v635 = vpack.c.bf16 %v631, %v631
        %v636 = vld [vmem:[#allocation9] sm:$0xf]
        %v637 = vld [vmem:[#allocation9 + $0x4] sm:$0xf]
        %v638 = vld [vmem:[#allocation9 + $0x8] sm:$0xf]
        %v639 = vld [vmem:[#allocation9 + $0xc] sm:$0xf]
        %v644 = vunpack.c.l.b16 %v636
        %v645 = vunpack.c.l.b16 %v637
        %v646 = vunpack.c.l.b16 %v638
        %v647 = vunpack.c.l.b16 %v639
        %v648 = vpack.c.b16 %v645, %v644
        %v649 = vpack.c.b16 %v647, %v646
        %vm652 = vcmask 261120
        %v654 = vsel %vm652, %v635, 0
        %656 = vmatprep.subr.bf16.mxu0 0
        %657 = vmatpush1.bf16.msra.mxu0 %v648
        %658 = vmatprep.subr.bf16.mxu0 0
        %659 = vmatpush1.bf16.msra.mxu0 %v649
        %660 = vmatprep.subr.bf16.mxu0 0
        %661 = vmatpush1.bf16.msra.mxu0 0
        %662 = vmatprep.subr.bf16.mxu0 0
        %663 = vmatpush1.bf16.msra.mxu0 0
        %664 = vmatprep.subr.bf16.mxu0 0
        %665 = vmatpush1.bf16.msra.mxu0 0
        %666 = vmatprep.subr.bf16.mxu0 0
        %667 = vmatpush1.bf16.msra.mxu0 0
        %668 = vmatprep.subr.bf16.mxu0 0
        %669 = vmatpush1.bf16.msra.mxu0 0
        %670 = vmatprep.subr.bf16.mxu0 0
        %671 = vmatpush1.bf16.msra.mxu0 0
        %672 = vmatprep.subr.bf16.mxu0 0
        %673 = vmatpush1.bf16.msra.mxu0 0
        %674 = vmatprep.subr.bf16.mxu0 0
        %675 = vmatpush1.bf16.msra.mxu0 0
        %676 = vmatprep.subr.bf16.mxu0 0
        %677 = vmatpush1.bf16.msra.mxu0 0
        %678 = vmatprep.subr.bf16.mxu0 0
        %679 = vmatpush1.bf16.msra.mxu0 0
        %680 = vmatprep.subr.bf16.mxu0 0
        %681 = vmatpush1.bf16.msra.mxu0 0
        %682 = vmatprep.subr.bf16.mxu0 0
        %683 = vmatpush1.bf16.msra.mxu0 0
        %684 = vmatprep.subr.bf16.mxu0 0
        %685 = vmatpush1.bf16.msra.mxu0 0
        %686 = vmatprep.subr.bf16.mxu0 0
        %687 = vmatpush1.bf16.msra.mxu0 0
        %688 = vmatprep.mubr.bf16.mxu0 0
        %689 = vmatmul.mubr.bf16.gmra.mrb[0].mxu0 %v654
        %v690 = vpop.f32.mrb[0].mxu0
        %v691 = vadd.f32 0.0, %v690
        %v692 = vpop.f32.mrb[0].mxu0
        %v693 = vpop.f32.mrb[0].mxu0
        %v694 = vpop.f32.mrb[0].mxu0
        %695 = vdwg.mxu0
        %v698 = vunpack.c.l.b16 %v633
        %v699 = vunpack.c.l.b16 %v634
        %v700 = vpack.c.b16 %v699, %v698
        %vm702 = vcmask 130048
        %v704 = vsel %vm702, %v632, 0
        %706 = vmatprep.subr.bf16.mxu0 0
        %707 = vmatpush1.bf16.msra.mxu0 %v700
        %708 = vmatprep.subr.bf16.mxu0 0
        %709 = vmatpush1.bf16.msra.mxu0 0
        %710 = vmatprep.subr.bf16.mxu0 0
        %711 = vmatpush1.bf16.msra.mxu0 0
        %712 = vmatprep.subr.bf16.mxu0 0
        %713 = vmatpush1.bf16.msra.mxu0 0
        %714 = vmatprep.subr.bf16.mxu0 0
        %715 = vmatpush1.bf16.msra.mxu0 0
        %716 = vmatprep.subr.bf16.mxu0 0
        %717 = vmatpush1.bf16.msra.mxu0 0
        %718 = vmatprep.subr.bf16.mxu0 0
        %719 = vmatpush1.bf16.msra.mxu0 0
        %720 = vmatprep.subr.bf16.mxu0 0
        %721 = vmatpush1.bf16.msra.mxu0 0
        %722 = vmatprep.subr.bf16.mxu0 0
        %723 = vmatpush1.bf16.msra.mxu0 0
        %724 = vmatprep.subr.bf16.mxu0 0
        %725 = vmatpush1.bf16.msra.mxu0 0
        %726 = vmatprep.subr.bf16.mxu0 0
        %727 = vmatpush1.bf16.msra.mxu0 0
        %728 = vmatprep.subr.bf16.mxu0 0
        %729 = vmatpush1.bf16.msra.mxu0 0
        %730 = vmatprep.subr.bf16.mxu0 0
        %731 = vmatpush1.bf16.msra.mxu0 0
        %732 = vmatprep.subr.bf16.mxu0 0
        %733 = vmatpush1.bf16.msra.mxu0 0
        %734 = vmatprep.subr.bf16.mxu0 0
        %735 = vmatpush1.bf16.msra.mxu0 0
        %736 = vmatprep.subr.bf16.mxu0 0
        %737 = vmatpush1.bf16.msra.mxu0 0
        %738 = vmatprep.mubr.bf16.mxu0 0
        %739 = vmatmul.mubr.bf16.gmra.mrb[0].mxu0 %v704
        %v740 = vpop.f32.mrb[0].mxu0
        %v741 = vadd.f32 %v691, %v740
        %v742 = vpop.f32.mrb[0].mxu0
        %v743 = vpop.f32.mrb[0].mxu0
        %v744 = vpop.f32.mrb[0].mxu0
        %745 = vdwg.mxu0
        %v746 = vld [vmem:[%s4] sm:$0x1]
        %v748 = vlaneseq
        %v749 = vshrl.u32 %v748, 7
        %v750 = vsub.s32 0, %v749
        %v751 = vrot.slane %v746, %v750
        %v753 = vadd.f32 %v741, %v751
        %v754 = vmax.f32 %v753, 0.0
        %v755 = vpack.c.bf16 %v754, %v754
        %v756 = vld [vmem:[%s5] sm:$0xf]
        %v757 = vld [vmem:[%s5 + $0x4] sm:$0xf]
        %v758 = vld [vmem:[%s5 + $0x8] sm:$0xf]
        %v759 = vld [vmem:[%s5 + $0xc] sm:$0xf]
        %v760 = vld [vmem:[%s6] sm:$0x1]
        %v762 = vlaneseq
        %v763 = vshrl.u32 %v762, 7
        %v764 = vsub.s32 0, %v763
        %v765 = vrot.slane %v760, %v764
        %v771 = vunpack.c.l.b16 %v756
        %v772 = vunpack.c.l.b16 %v757
        %v773 = vunpack.c.l.b16 %v758
        %v774 = vunpack.c.l.b16 %v759
        %v775 = vpack.c.b16 %v772, %v771
        %v776 = vpack.c.b16 %v774, %v773
        %v780 = vsel %vm652, %v755, 0
        %782 = vmatprep.subr.bf16.mxu0 0
        %783 = vmatpush1.bf16.msra.mxu0 %v775
        %784 = vmatprep.subr.bf16.mxu0 0
        %785 = vmatpush1.bf16.msra.mxu0 %v776
        %786 = vmatprep.subr.bf16.mxu0 0
        %787 = vmatpush1.bf16.msra.mxu0 0
        %788 = vmatprep.subr.bf16.mxu0 0
        %789 = vmatpush1.bf16.msra.mxu0 0
        %790 = vmatprep.subr.bf16.mxu0 0
        %791 = vmatpush1.bf16.msra.mxu0 0
        %792 = vmatprep.subr.bf16.mxu0 0
        %793 = vmatpush1.bf16.msra.mxu0 0
        %794 = vmatprep.subr.bf16.mxu0 0
        %795 = vmatpush1.bf16.msra.mxu0 0
        %796 = vmatprep.subr.bf16.mxu0 0
        %797 = vmatpush1.bf16.msra.mxu0 0
        %798 = vmatprep.subr.bf16.mxu0 0
        %799 = vmatpush1.bf16.msra.mxu0 0
        %800 = vmatprep.subr.bf16.mxu0 0
        %801 = vmatpush1.bf16.msra.mxu0 0
        %802 = vmatprep.subr.bf16.mxu0 0
        %803 = vmatpush1.bf16.msra.mxu0 0
        %804 = vmatprep.subr.bf16.mxu0 0
        %805 = vmatpush1.bf16.msra.mxu0 0
        %806 = vmatprep.subr.bf16.mxu0 0
        %807 = vmatpush1.bf16.msra.mxu0 0
        %808 = vmatprep.subr.bf16.mxu0 0
        %809 = vmatpush1.bf16.msra.mxu0 0
        %810 = vmatprep.subr.bf16.mxu0 0
        %811 = vmatpush1.bf16.msra.mxu0 0
        %812 = vmatprep.subr.bf16.mxu0 0
        %813 = vmatpush1.bf16.msra.mxu0 0
        %814 = vmatprep.mubr.bf16.mxu0 0
        %815 = vmatmul.mubr.bf16.gmra.mrb[0].mxu0 %v780
        %v816 = vpop.f32.mrb[0].mxu0
        %v817 = vadd.f32 %v765, %v816
        %v818 = vpop.f32.mrb[0].mxu0
        %v819 = vpop.f32.mrb[0].mxu0
        %v820 = vpop.f32.mrb[0].mxu0
        %821 = vdwg.mxu0
        %823 = vrot.lane.b32.xlu0 %v817, 120
        %v824 = vpop.permute.xlu0 %823
        %826 = vrot.lane.b32.xlu0 %v817, 112
        %v827 = vpop.permute.xlu0 %826
        %829 = vrot.lane.b32.xlu0 %v817, 104
        %v830 = vpop.permute.xlu0 %829
        %v832 = vpack.c.bf16 %v817, %v817
        %v833 = vpack.c.bf16 %v824, %v824
        %v834 = vpack.c.bf16 %v827, %v827
        %v835 = vpack.c.bf16 %v830, %v830
        %837 = vrot.lane.b32.xlu0 %v832, 96
        %v838 = vpop.permute.xlu0 %837
        %vm839 = vcmask 64512
        %v841 = vsel %vm839, %v832, 0
        %v844 = vsel %vm839, %v838, 0
        %846 = vmatprep.subr.bf16.mxu0 0
        %847 = vmatpush1.bf16.xpose.msra.mxu0 %v844
        %848 = vmatprep.subr.bf16.mxu0 0
        %849 = vmatpush1.bf16.xpose.msra.mxu0 0
        %850 = vmatprep.subr.bf16.mxu0 0
        %851 = vmatpush1.bf16.xpose.msra.mxu0 0
        %852 = vmatprep.subr.bf16.mxu0 0
        %853 = vmatpush1.bf16.xpose.msra.mxu0 0
        %854 = vmatprep.subr.bf16.mxu0 0
        %855 = vmatpush1.bf16.xpose.msra.mxu0 0
        %856 = vmatprep.subr.bf16.mxu0 0
        %857 = vmatpush1.bf16.xpose.msra.mxu0 0
        %858 = vmatprep.subr.bf16.mxu0 0
        %859 = vmatpush1.bf16.xpose.msra.mxu0 0
        %860 = vmatprep.subr.bf16.mxu0 0
        %861 = vmatpush1.bf16.xpose.msra.mxu0 0
        %862 = vmatprep.subr.bf16.mxu0 0
        %863 = vmatpush1.bf16.xpose.msra.mxu0 0
        %864 = vmatprep.subr.bf16.mxu0 0
        %865 = vmatpush1.bf16.xpose.msra.mxu0 0
        %866 = vmatprep.subr.bf16.mxu0 0
        %867 = vmatpush1.bf16.xpose.msra.mxu0 0
        %868 = vmatprep.subr.bf16.mxu0 0
        %869 = vmatpush1.bf16.xpose.msra.mxu0 0
        %870 = vmatprep.subr.bf16.mxu0 0
        %871 = vmatpush1.bf16.xpose.msra.mxu0 0
        %872 = vmatprep.subr.bf16.mxu0 0
        %873 = vmatpush1.bf16.xpose.msra.mxu0 0
        %874 = vmatprep.subr.bf16.mxu0 0
        %875 = vmatpush1.bf16.xpose.msra.mxu0 0
        %876 = vmatprep.subr.bf16.mxu0 0
        %877 = vmatpush1.bf16.xpose.msra.mxu0 0
        %878 = vmatprep.mubr.bf16.mxu0 0
        %879 = vmatmul.mubr.bf16.gmra.mrb[0].mxu0 %v841
        %v880 = vpop.f32.mrb[0].mxu0
        %v881 = vadd.f32 0.0, %v880
        %v882 = vpop.f32.mrb[0].mxu0
        %v883 = vpop.f32.mrb[0].mxu0
        %v884 = vpop.f32.mrb[0].mxu0
        %885 = vdwg.mxu0
        %887 = vrot.lane.b32.xlu0 %v833, 96
        %v888 = vpop.permute.xlu0 %887
        %v890 = vsel %vm839, %v833, 0
        %v893 = vsel %vm839, %v888, 0
        %895 = vmatprep.subr.bf16.mxu0 0
        %896 = vmatpush1.bf16.xpose.msra.mxu0 %v893
        %897 = vmatprep.subr.bf16.mxu0 0
        %898 = vmatpush1.bf16.xpose.msra.mxu0 0
        %899 = vmatprep.subr.bf16.mxu0 0
        %900 = vmatpush1.bf16.xpose.msra.mxu0 0
        %901 = vmatprep.subr.bf16.mxu0 0
        %902 = vmatpush1.bf16.xpose.msra.mxu0 0
        %903 = vmatprep.subr.bf16.mxu0 0
        %904 = vmatpush1.bf16.xpose.msra.mxu0 0
        %905 = vmatprep.subr.bf16.mxu0 0
        %906 = vmatpush1.bf16.xpose.msra.mxu0 0
        %907 = vmatprep.subr.bf16.mxu0 0
        %908 = vmatpush1.bf16.xpose.msra.mxu0 0
        %909 = vmatprep.subr.bf16.mxu0 0
        %910 = vmatpush1.bf16.xpose.msra.mxu0 0
        %911 = vmatprep.subr.bf16.mxu0 0
        %912 = vmatpush1.bf16.xpose.msra.mxu0 0
        %913 = vmatprep.subr.bf16.mxu0 0
        %914 = vmatpush1.bf16.xpose.msra.mxu0 0
        %915 = vmatprep.subr.bf16.mxu0 0
        %916 = vmatpush1.bf16.xpose.msra.mxu0 0
        %917 = vmatprep.subr.bf16.mxu0 0
        %918 = vmatpush1.bf16.xpose.msra.mxu0 0
        %919 = vmatprep.subr.bf16.mxu0 0
        %920 = vmatpush1.bf16.xpose.msra.mxu0 0
        %921 = vmatprep.subr.bf16.mxu0 0
        %922 = vmatpush1.bf16.xpose.msra.mxu0 0
        %923 = vmatprep.subr.bf16.mxu0 0
        %924 = vmatpush1.bf16.xpose.msra.mxu0 0
        %925 = vmatprep.subr.bf16.mxu0 0
        %926 = vmatpush1.bf16.xpose.msra.mxu0 0
        %927 = vmatprep.mubr.bf16.mxu0 0
        %928 = vmatmul.mubr.bf16.gmra.mrb[0].mxu0 %v890
        %v929 = vpop.f32.mrb[0].mxu0
        %v930 = vadd.f32 0.0, %v929
        %v931 = vpop.f32.mrb[0].mxu0
        %v932 = vpop.f32.mrb[0].mxu0
        %v933 = vpop.f32.mrb[0].mxu0
        %934 = vdwg.mxu0
        %936 = vrot.lane.b32.xlu0 %v834, 96
        %v937 = vpop.permute.xlu0 %936
        %v939 = vsel %vm839, %v834, 0
        %v942 = vsel %vm839, %v937, 0
        %944 = vmatprep.subr.bf16.mxu0 0
        %945 = vmatpush1.bf16.xpose.msra.mxu0 %v942
        %946 = vmatprep.subr.bf16.mxu0 0
        %947 = vmatpush1.bf16.xpose.msra.mxu0 0
        %948 = vmatprep.subr.bf16.mxu0 0
        %949 = vmatpush1.bf16.xpose.msra.mxu0 0
        %950 = vmatprep.subr.bf16.mxu0 0
        %951 = vmatpush1.bf16.xpose.msra.mxu0 0
        %952 = vmatprep.subr.bf16.mxu0 0
        %953 = vmatpush1.bf16.xpose.msra.mxu0 0
        %954 = vmatprep.subr.bf16.mxu0 0
        %955 = vmatpush1.bf16.xpose.msra.mxu0 0
        %956 = vmatprep.subr.bf16.mxu0 0
        %957 = vmatpush1.bf16.xpose.msra.mxu0 0
        %958 = vmatprep.subr.bf16.mxu0 0
        %959 = vmatpush1.bf16.xpose.msra.mxu0 0
        %960 = vmatprep.subr.bf16.mxu0 0
        %961 = vmatpush1.bf16.xpose.msra.mxu0 0
        %962 = vmatprep.subr.bf16.mxu0 0
        %963 = vmatpush1.bf16.xpose.msra.mxu0 0
        %964 = vmatprep.subr.bf16.mxu0 0
        %965 = vmatpush1.bf16.xpose.msra.mxu0 0
        %966 = vmatprep.subr.bf16.mxu0 0
        %967 = vmatpush1.bf16.xpose.msra.mxu0 0
        %968 = vmatprep.subr.bf16.mxu0 0
        %969 = vmatpush1.bf16.xpose.msra.mxu0 0
        %970 = vmatprep.subr.bf16.mxu0 0
        %971 = vmatpush1.bf16.xpose.msra.mxu0 0
        %972 = vmatprep.subr.bf16.mxu0 0
        %973 = vmatpush1.bf16.xpose.msra.mxu0 0
        %974 = vmatprep.subr.bf16.mxu0 0
        %975 = vmatpush1.bf16.xpose.msra.mxu0 0
        %976 = vmatprep.mubr.bf16.mxu0 0
        %977 = vmatmul.mubr.bf16.gmra.mrb[0].mxu0 %v939
        %v978 = vpop.f32.mrb[0].mxu0
        %v979 = vadd.f32 0.0, %v978
        %v980 = vpop.f32.mrb[0].mxu0
        %v981 = vpop.f32.mrb[0].mxu0
        %v982 = vpop.f32.mrb[0].mxu0
        %983 = vdwg.mxu0
        %985 = vrot.lane.b32.xlu0 %v835, 96
        %v986 = vpop.permute.xlu0 %985
        %v988 = vsel %vm839, %v835, 0
        %v991 = vsel %vm839, %v986, 0
        %993 = vmatprep.subr.bf16.mxu0 0
        %994 = vmatpush1.bf16.xpose.msra.mxu0 %v991
        %995 = vmatprep.subr.bf16.mxu0 0
        %996 = vmatpush1.bf16.xpose.msra.mxu0 0
        %997 = vmatprep.subr.bf16.mxu0 0
        %998 = vmatpush1.bf16.xpose.msra.mxu0 0
        %999 = vmatprep.subr.bf16.mxu0 0
        %1000 = vmatpush1.bf16.xpose.msra.mxu0 0
        %1001 = vmatprep.subr.bf16.mxu0 0
        %1002 = vmatpush1.bf16.xpose.msra.mxu0 0
        %1003 = vmatprep.subr.bf16.mxu0 0
        %1004 = vmatpush1.bf16.xpose.msra.mxu0 0
        %1005 = vmatprep.subr.bf16.mxu0 0
        %1006 = vmatpush1.bf16.xpose.msra.mxu0 0
        %1007 = vmatprep.subr.bf16.mxu0 0
        %1008 = vmatpush1.bf16.xpose.msra.mxu0 0
        %1009 = vmatprep.subr.bf16.mxu0 0
        %1010 = vmatpush1.bf16.xpose.msra.mxu0 0
        %1011 = vmatprep.subr.bf16.mxu0 0
        %1012 = vmatpush1.bf16.xpose.msra.mxu0 0
        %1013 = vmatprep.subr.bf16.mxu0 0
        %1014 = vmatpush1.bf16.xpose.msra.mxu0 0
        %1015 = vmatprep.subr.bf16.mxu0 0
        %1016 = vmatpush1.bf16.xpose.msra.mxu0 0
        %1017 = vmatprep.subr.bf16.mxu0 0
        %1018 = vmatpush1.bf16.xpose.msra.mxu0 0
        %1019 = vmatprep.subr.bf16.mxu0 0
        %1020 = vmatpush1.bf16.xpose.msra.mxu0 0
        %1021 = vmatprep.subr.bf16.mxu0 0
        %1022 = vmatpush1.bf16.xpose.msra.mxu0 0
        %1023 = vmatprep.subr.bf16.mxu0 0
        %1024 = vmatpush1.bf16.xpose.msra.mxu0 0
        %1025 = vmatprep.mubr.bf16.mxu0 0
        %1026 = vmatmul.mubr.bf16.gmra.mrb[0].mxu0 %v988
        %v1027 = vpop.f32.mrb[0].mxu0
        %v1028 = vadd.f32 0.0, %v1027
        %v1029 = vpop.f32.mrb[0].mxu0
        %v1030 = vpop.f32.mrb[0].mxu0
        %v1031 = vpop.f32.mrb[0].mxu0
        %1032 = vdwg.mxu0
        %v1033 = vsel %vm839, %v881, -inf
        %1034 = vmax.xlane.f32.xlu0 %v1033
        %v1035 = vpop.xlane.xlu0 %1034
        %v1036 = vsel %vm839, %v930, -inf
        %1037 = vmax.xlane.f32.xlu0 %v1036
        %v1038 = vpop.xlane.xlu0 %1037
        %v1039 = vsel %vm839, %v979, -inf
        %1040 = vmax.xlane.f32.xlu0 %v1039
        %v1041 = vpop.xlane.xlu0 %1040
        %v1042 = vsel %vm839, %v1028, -inf
        %1043 = vmax.xlane.f32.xlu0 %v1042
        %v1044 = vpop.xlane.xlu0 %1043
        %v1045 = vsub.f32 %v881, %v1035
        %v1046 = vsub.f32 %v930, %v1038
        %v1047 = vsub.f32 %v979, %v1041
        %v1048 = vsub.f32 %v1028, %v1044
        %v1049 = vmul.f32 %v1045, 1.442695
        %v1050 = vpow.pop %v1049
        %v1051 = vmul.f32 %v1046, 1.442695
        %v1052 = vpow.pop %v1051
        %v1053 = vmul.f32 %v1047, 1.442695
        %v1054 = vpow.pop %v1053
        %v1055 = vmul.f32 %v1048, 1.442695
        %v1056 = vpow.pop %v1055
        %v1057 = vsel %vm839, %v1050, 0.0
        %1058 = vadd.xlane.f32.xlu0 %v1057
        %v1059 = vpop.xlane.xlu0 %1058
        %v1060 = vsel %vm839, %v1052, 0.0
        %1061 = vadd.xlane.f32.xlu0 %v1060
        %v1062 = vpop.xlane.xlu0 %1061
        %v1063 = vsel %vm839, %v1054, 0.0
        %1064 = vadd.xlane.f32.xlu0 %v1063
        %v1065 = vpop.xlane.xlu0 %1064
        %v1066 = vsel %vm839, %v1056, 0.0
        %1067 = vadd.xlane.f32.xlu0 %v1066
        %v1068 = vpop.xlane.xlu0 %1067
        %v1069 = vrcp.pop %v1059
        %v1070 = vrcp.pop %v1062
        %v1071 = vrcp.pop %v1065
        %v1072 = vrcp.pop %v1068
        %v1073 = vmul.f32 %v1050, %v1069
        %v1074 = vmul.f32 %v1052, %v1070
        %v1075 = vmul.f32 %v1054, %v1071
        %v1076 = vmul.f32 %v1056, %v1072
        %v1077 = vpack.c.bf16 %v1073, %v1073
        %v1078 = vpack.c.bf16 %v1074, %v1074
        %v1079 = vpack.c.bf16 %v1075, %v1075
        %v1080 = vpack.c.bf16 %v1076, %v1076
        %1081 = vrot.lane.b32.xlu0 %v832, 64
        %v1082 = vpop.permute.xlu0 %1081
        %v1084 = vsel %vm839, %v1077, 0
        %vm1086 = vcmask 1043456
        %v1088 = vsel %vm1086, %v1082, 0
        %1090 = vmatprep.subr.bf16.mxu0 0
        %1091 = vmatpush1.bf16.msra.mxu0 %v1088
        %1092 = vmatprep.subr.bf16.mxu0 0
        %1093 = vmatpush1.bf16.msra.mxu0 0
        %1094 = vmatprep.subr.bf16.mxu0 0
        %1095 = vmatpush1.bf16.msra.mxu0 0
        %1096 = vmatprep.subr.bf16.mxu0 0
        %1097 = vmatpush1.bf16.msra.mxu0 0
        %1098 = vmatprep.subr.bf16.mxu0 0
        %1099 = vmatpush1.bf16.msra.mxu0 0
        %1100 = vmatprep.subr.bf16.mxu0 0
        %1101 = vmatpush1.bf16.msra.mxu0 0
        %1102 = vmatprep.subr.bf16.mxu0 0
        %1103 = vmatpush1.bf16.msra.mxu0 0
        %1104 = vmatprep.subr.bf16.mxu0 0
        %1105 = vmatpush1.bf16.msra.mxu0 0
        %1106 = vmatprep.subr.bf16.mxu0 0
        %1107 = vmatpush1.bf16.msra.mxu0 0
        %1108 = vmatprep.subr.bf16.mxu0 0
        %1109 = vmatpush1.bf16.msra.mxu0 0
        %1110 = vmatprep.subr.bf16.mxu0 0
        %1111 = vmatpush1.bf16.msra.mxu0 0
        %1112 = vmatprep.subr.bf16.mxu0 0
        %1113 = vmatpush1.bf16.msra.mxu0 0
        %1114 = vmatprep.subr.bf16.mxu0 0
        %1115 = vmatpush1.bf16.msra.mxu0 0
        %1116 = vmatprep.subr.bf16.mxu0 0
        %1117 = vmatpush1.bf16.msra.mxu0 0
        %1118 = vmatprep.subr.bf16.mxu0 0
        %1119 = vmatpush1.bf16.msra.mxu0 0
        %1120 = vmatprep.subr.bf16.mxu0 0
        %1121 = vmatpush1.bf16.msra.mxu0 0
        %1122 = vmatprep.mubr.bf16.mxu0 0
        %1123 = vmatmul.mubr.bf16.gmra.mrb[0].mxu0 %v1084
        %v1124 = vpop.f32.mrb[0].mxu0
        %v1125 = vadd.f32 0.0, %v1124
        %v1126 = vpop.f32.mrb[0].mxu0
        %v1127 = vpop.f32.mrb[0].mxu0
        %v1128 = vpop.f32.mrb[0].mxu0
        %1129 = vdwg.mxu0
        %1130 = vrot.lane.b32.xlu0 %v833, 64
        %v1131 = vpop.permute.xlu0 %1130
        %v1133 = vsel %vm839, %v1078, 0
        %v1136 = vsel %vm1086, %v1131, 0
        %1138 = vmatprep.subr.bf16.mxu0 0
        %1139 = vmatpush1.bf16.msra.mxu0 %v1136
        %1140 = vmatprep.subr.bf16.mxu0 0
        %1141 = vmatpush1.bf16.msra.mxu0 0
        %1142 = vmatprep.subr.bf16.mxu0 0
        %1143 = vmatpush1.bf16.msra.mxu0 0
        %1144 = vmatprep.subr.bf16.mxu0 0
        %1145 = vmatpush1.bf16.msra.mxu0 0
        %1146 = vmatprep.subr.bf16.mxu0 0
        %1147 = vmatpush1.bf16.msra.mxu0 0
        %1148 = vmatprep.subr.bf16.mxu0 0
        %1149 = vmatpush1.bf16.msra.mxu0 0
        %1150 = vmatprep.subr.bf16.mxu0 0
        %1151 = vmatpush1.bf16.msra.mxu0 0
        %1152 = vmatprep.subr.bf16.mxu0 0
        %1153 = vmatpush1.bf16.msra.mxu0 0
        %1154 = vmatprep.subr.bf16.mxu0 0
        %1155 = vmatpush1.bf16.msra.mxu0 0
        %1156 = vmatprep.subr.bf16.mxu0 0
        %1157 = vmatpush1.bf16.msra.mxu0 0
        %1158 = vmatprep.subr.bf16.mxu0 0
        %1159 = vmatpush1.bf16.msra.mxu0 0
        %1160 = vmatprep.subr.bf16.mxu0 0
        %1161 = vmatpush1.bf16.msra.mxu0 0
        %1162 = vmatprep.subr.bf16.mxu0 0
        %1163 = vmatpush1.bf16.msra.mxu0 0
        %1164 = vmatprep.subr.bf16.mxu0 0
        %1165 = vmatpush1.bf16.msra.mxu0 0
        %1166 = vmatprep.subr.bf16.mxu0 0
        %1167 = vmatpush1.bf16.msra.mxu0 0
        %1168 = vmatprep.subr.bf16.mxu0 0
        %1169 = vmatpush1.bf16.msra.mxu0 0
        %1170 = vmatprep.mubr.bf16.mxu0 0
        %1171 = vmatmul.mubr.bf16.gmra.mrb[0].mxu0 %v1133
        %v1172 = vpop.f32.mrb[0].mxu0
        %v1173 = vadd.f32 0.0, %v1172
        %v1174 = vpop.f32.mrb[0].mxu0
        %v1175 = vpop.f32.mrb[0].mxu0
        %v1176 = vpop.f32.mrb[0].mxu0
        %1177 = vdwg.mxu0
        %1178 = vrot.lane.b32.xlu0 %v834, 64
        %v1179 = vpop.permute.xlu0 %1178
        %v1181 = vsel %vm839, %v1079, 0
        %v1184 = vsel %vm1086, %v1179, 0
        %1186 = vmatprep.subr.bf16.mxu0 0
        %1187 = vmatpush1.bf16.msra.mxu0 %v1184
        %1188 = vmatprep.subr.bf16.mxu0 0
        %1189 = vmatpush1.bf16.msra.mxu0 0
        %1190 = vmatprep.subr.bf16.mxu0 0
        %1191 = vmatpush1.bf16.msra.mxu0 0
        %1192 = vmatprep.subr.bf16.mxu0 0
        %1193 = vmatpush1.bf16.msra.mxu0 0
        %1194 = vmatprep.subr.bf16.mxu0 0
        %1195 = vmatpush1.bf16.msra.mxu0 0
        %1196 = vmatprep.subr.bf16.mxu0 0
        %1197 = vmatpush1.bf16.msra.mxu0 0
        %1198 = vmatprep.subr.bf16.mxu0 0
        %1199 = vmatpush1.bf16.msra.mxu0 0
        %1200 = vmatprep.subr.bf16.mxu0 0
        %1201 = vmatpush1.bf16.msra.mxu0 0
        %1202 = vmatprep.subr.bf16.mxu0 0
        %1203 = vmatpush1.bf16.msra.mxu0 0
        %1204 = vmatprep.subr.bf16.mxu0 0
        %1205 = vmatpush1.bf16.msra.mxu0 0
        %1206 = vmatprep.subr.bf16.mxu0 0
        %1207 = vmatpush1.bf16.msra.mxu0 0
        %1208 = vmatprep.subr.bf16.mxu0 0
        %1209 = vmatpush1.bf16.msra.mxu0 0
        %1210 = vmatprep.subr.bf16.mxu0 0
        %1211 = vmatpush1.bf16.msra.mxu0 0
        %1212 = vmatprep.subr.bf16.mxu0 0
        %1213 = vmatpush1.bf16.msra.mxu0 0
        %1214 = vmatprep.subr.bf16.mxu0 0
        %1215 = vmatpush1.bf16.msra.mxu0 0
        %1216 = vmatprep.subr.bf16.mxu0 0
        %1217 = vmatpush1.bf16.msra.mxu0 0
        %1218 = vmatprep.mubr.bf16.mxu0 0
        %1219 = vmatmul.mubr.bf16.gmra.mrb[0].mxu0 %v1181
        %v1220 = vpop.f32.mrb[0].mxu0
        %v1221 = vadd.f32 0.0, %v1220
        %v1222 = vpop.f32.mrb[0].mxu0
        %v1223 = vpop.f32.mrb[0].mxu0
        %v1224 = vpop.f32.mrb[0].mxu0
        %1225 = vdwg.mxu0
        %1226 = vrot.lane.b32.xlu0 %v835, 64
        %v1227 = vpop.permute.xlu0 %1226
        %v1229 = vsel %vm839, %v1080, 0
        %v1232 = vsel %vm1086, %v1227, 0
        %1234 = vmatprep.subr.bf16.mxu0 0
        %1235 = vmatpush1.bf16.msra.mxu0 %v1232
        %1236 = vmatprep.subr.bf16.mxu0 0
        %1237 = vmatpush1.bf16.msra.mxu0 0
        %1238 = vmatprep.subr.bf16.mxu0 0
        %1239 = vmatpush1.bf16.msra.mxu0 0
        %1240 = vmatprep.subr.bf16.mxu0 0
        %1241 = vmatpush1.bf16.msra.mxu0 0
        %1242 = vmatprep.subr.bf16.mxu0 0
        %1243 = vmatpush1.bf16.msra.mxu0 0
        %1244 = vmatprep.subr.bf16.mxu0 0
        %1245 = vmatpush1.bf16.msra.mxu0 0
        %1246 = vmatprep.subr.bf16.mxu0 0
        %1247 = vmatpush1.bf16.msra.mxu0 0
        %1248 = vmatprep.subr.bf16.mxu0 0
        %1249 = vmatpush1.bf16.msra.mxu0 0
        %1250 = vmatprep.subr.bf16.mxu0 0
        %1251 = vmatpush1.bf16.msra.mxu0 0
        %1252 = vmatprep.subr.bf16.mxu0 0
        %1253 = vmatpush1.bf16.msra.mxu0 0
        %1254 = vmatprep.subr.bf16.mxu0 0
        %1255 = vmatpush1.bf16.msra.mxu0 0
        %1256 = vmatprep.subr.bf16.mxu0 0
        %1257 = vmatpush1.bf16.msra.mxu0 0
        %1258 = vmatprep.subr.bf16.mxu0 0
        %1259 = vmatpush1.bf16.msra.mxu0 0
        %1260 = vmatprep.subr.bf16.mxu0 0
        %1261 = vmatpush1.bf16.msra.mxu0 0
        %1262 = vmatprep.subr.bf16.mxu0 0
        %1263 = vmatpush1.bf16.msra.mxu0 0
        %1264 = vmatprep.subr.bf16.mxu0 0
        %1265 = vmatpush1.bf16.msra.mxu0 0
        %1266 = vmatprep.mubr.bf16.mxu0 0
        %1267 = vmatmul.mubr.bf16.gmra.mrb[0].mxu0 %v1229
        %v1268 = vpop.f32.mrb[0].mxu0
        %v1269 = vadd.f32 0.0, %v1268
        %v1270 = vpop.f32.mrb[0].mxu0
        %v1271 = vpop.f32.mrb[0].mxu0
        %v1272 = vpop.f32.mrb[0].mxu0
        %1273 = vdwg.mxu0
        %1275 = vrot.lane.b32.xlu0 %v1173, 8
        %v1276 = vpop.permute.xlu0 %1275
        %1279 = vrot.lane.b32.xlu0 %v1221, 16
        %v1280 = vpop.permute.xlu0 %1279
        %1283 = vrot.lane.b32.xlu0 %v1269, 24
        %v1284 = vpop.permute.xlu0 %1283
        %v1286 = vsel %vm839, %v1125, %v1276
        %v1287 = vsel %vm702, %v1286, %v1280
        %vm1288 = vcmask 195584
        %v1289 = vsel %vm1288, %v1287, %v1284
        %v1290 = vpack.c.bf16 %v1289, %v1289
        %v1291 = vld [vmem:[#allocation11] sm:$0xf]
        %v1292 = vld [vmem:[#allocation11 + $0x4] sm:$0xf]
        %v1293 = vld [vmem:[#allocation11 + $0x8] sm:$0xf]
        %v1294 = vld [vmem:[#allocation11 + $0xc] sm:$0xf]
        %v1295 = vld [vmem:[#allocation12] sm:$0x1]
        %v1297 = vlaneseq
        %v1298 = vshrl.u32 %v1297, 7
        %v1299 = vsub.s32 0, %v1298
        %v1300 = vrot.slane %v1295, %v1299
        %v1306 = vunpack.c.l.b16 %v1291
        %v1307 = vunpack.c.l.b16 %v1292
        %v1308 = vunpack.c.l.b16 %v1293
        %v1309 = vunpack.c.l.b16 %v1294
        %v1310 = vpack.c.b16 %v1307, %v1306
        %v1311 = vpack.c.b16 %v1309, %v1308
        %v1315 = vsel %vm652, %v1290, 0
        %1317 = vmatprep.subr.bf16.mxu0 0
        %1318 = vmatpush1.bf16.msra.mxu0 %v1310
        %1319 = vmatprep.subr.bf16.mxu0 0
        %1320 = vmatpush1.bf16.msra.mxu0 %v1311
        %1321 = vmatprep.subr.bf16.mxu0 0
        %1322 = vmatpush1.bf16.msra.mxu0 0
        %1323 = vmatprep.subr.bf16.mxu0 0
        %1324 = vmatpush1.bf16.msra.mxu0 0
        %1325 = vmatprep.subr.bf16.mxu0 0
        %1326 = vmatpush1.bf16.msra.mxu0 0
        %1327 = vmatprep.subr.bf16.mxu0 0
        %1328 = vmatpush1.bf16.msra.mxu0 0
        %1329 = vmatprep.subr.bf16.mxu0 0
        %1330 = vmatpush1.bf16.msra.mxu0 0
        %1331 = vmatprep.subr.bf16.mxu0 0
        %1332 = vmatpush1.bf16.msra.mxu0 0
        %1333 = vmatprep.subr.bf16.mxu0 0
        %1334 = vmatpush1.bf16.msra.mxu0 0
        %1335 = vmatprep.subr.bf16.mxu0 0
        %1336 = vmatpush1.bf16.msra.mxu0 0
        %1337 = vmatprep.subr.bf16.mxu0 0
        %1338 = vmatpush1.bf16.msra.mxu0 0
        %1339 = vmatprep.subr.bf16.mxu0 0
        %1340 = vmatpush1.bf16.msra.mxu0 0
        %1341 = vmatprep.subr.bf16.mxu0 0
        %1342 = vmatpush1.bf16.msra.mxu0 0
        %1343 = vmatprep.subr.bf16.mxu0 0
        %1344 = vmatpush1.bf16.msra.mxu0 0
        %1345 = vmatprep.subr.bf16.mxu0 0
        %1346 = vmatpush1.bf16.msra.mxu0 0
        %1347 = vmatprep.subr.bf16.mxu0 0
        %1348 = vmatpush1.bf16.msra.mxu0 0
        %1349 = vmatprep.mubr.bf16.mxu0 0
        %1350 = vmatmul.mubr.bf16.gmra.mrb[0].mxu0 %v1315
        %v1351 = vpop.f32.mrb[0].mxu0
        %v1352 = vadd.f32 %v1300, %v1351
        %v1353 = vpop.f32.mrb[0].mxu0
        %v1354 = vpop.f32.mrb[0].mxu0
        %v1355 = vpop.f32.mrb[0].mxu0
        %1356 = vdwg.mxu0
        %v1357 = vadd.f32 %v754, %v1352
        %v1358 = vpack.c.bf16 %v1357, %v1357
        %v1359 = vld [vmem:[%s9] sm:$0xf]
        %v1360 = vld [vmem:[%s9 + $0x4] sm:$0xf]
        %v1361 = vld [vmem:[%s9 + $0x8] sm:$0xf]
        %v1362 = vld [vmem:[%s9 + $0xc] sm:$0xf]
        %v1363 = vld [vmem:[%s10] sm:$0x1]
        %v1365 = vlaneseq
        %v1366 = vshrl.u32 %v1365, 7
        %v1367 = vsub.s32 0, %v1366
        %v1368 = vrot.slane %v1363, %v1367
        %v1374 = vunpack.c.l.b16 %v1359
        %v1375 = vunpack.c.l.b16 %v1360
        %v1376 = vunpack.c.l.b16 %v1361
        %v1377 = vunpack.c.l.b16 %v1362
        %v1378 = vpack.c.b16 %v1375, %v1374
        %v1379 = vpack.c.b16 %v1377, %v1376
        %v1383 = vsel %vm652, %v1358, 0
        %1385 = vmatprep.subr.bf16.mxu0 0
        %1386 = vmatpush1.bf16.msra.mxu0 %v1378
        %1387 = vmatprep.subr.bf16.mxu0 0
        %1388 = vmatpush1.bf16.msra.mxu0 %v1379
        %1389 = vmatprep.subr.bf16.mxu0 0
        %1390 = vmatpush1.bf16.msra.mxu0 0
        %1391 = vmatprep.subr.bf16.mxu0 0
        %1392 = vmatpush1.bf16.msra.mxu0 0
        %1393 = vmatprep.subr.bf16.mxu0 0
        %1394 = vmatpush1.bf16.msra.mxu0 0
        %1395 = vmatprep.subr.bf16.mxu0 0
        %1396 = vmatpush1.bf16.msra.mxu0 0
        %1397 = vmatprep.subr.bf16.mxu0 0
        %1398 = vmatpush1.bf16.msra.mxu0 0
        %1399 = vmatprep.subr.bf16.mxu0 0
        %1400 = vmatpush1.bf16.msra.mxu0 0
        %1401 = vmatprep.subr.bf16.mxu0 0
        %1402 = vmatpush1.bf16.msra.mxu0 0
        %1403 = vmatprep.subr.bf16.mxu0 0
        %1404 = vmatpush1.bf16.msra.mxu0 0
        %1405 = vmatprep.subr.bf16.mxu0 0
        %1406 = vmatpush1.bf16.msra.mxu0 0
        %1407 = vmatprep.subr.bf16.mxu0 0
        %1408 = vmatpush1.bf16.msra.mxu0 0
        %1409 = vmatprep.subr.bf16.mxu0 0
        %1410 = vmatpush1.bf16.msra.mxu0 0
        %1411 = vmatprep.subr.bf16.mxu0 0
        %1412 = vmatpush1.bf16.msra.mxu0 0
        %1413 = vmatprep.subr.bf16.mxu0 0
        %1414 = vmatpush1.bf16.msra.mxu0 0
        %1415 = vmatprep.subr.bf16.mxu0 0
        %1416 = vmatpush1.bf16.msra.mxu0 0
        %1417 = vmatprep.mubr.bf16.mxu0 0
        %1418 = vmatmul.mubr.bf16.gmra.mrb[0].mxu0 %v1383
        %v1419 = vpop.f32.mrb[0].mxu0
        %v1420 = vadd.f32 %v1368, %v1419
        %v1421 = vpop.f32.mrb[0].mxu0
        %v1422 = vpop.f32.mrb[0].mxu0
        %v1423 = vpop.f32.mrb[0].mxu0
        %1424 = vdwg.mxu0
        %v1425 = vmax.f32 %v1420, 0.0
        %v1426 = vpack.c.bf16 %v1425, %v1425
        %v1427 = vld [vmem:[#allocation14] sm:$0xf]
        %v1428 = vld [vmem:[#allocation14 + $0x4] sm:$0xf]
        %v1429 = vld [vmem:[#allocation14 + $0x8] sm:$0xf]
        %v1430 = vld [vmem:[#allocation14 + $0xc] sm:$0xf]
        %v1435 = vunpack.c.l.b16 %v1427
        %v1436 = vunpack.c.l.b16 %v1428
        %v1437 = vunpack.c.l.b16 %v1429
        %v1438 = vunpack.c.l.b16 %v1430
        %v1439 = vpack.c.b16 %v1436, %v1435
        %v1440 = vpack.c.b16 %v1438, %v1437
        %v1444 = vsel %vm652, %v1426, 0
        %1446 = vmatprep.subr.bf16.mxu0 0
        %1447 = vmatpush1.bf16.msra.mxu0 %v1439
        %1448 = vmatprep.subr.bf16.mxu0 0
        %1449 = vmatpush1.bf16.msra.mxu0 %v1440
        %1450 = vmatprep.subr.bf16.mxu0 0
        %1451 = vmatpush1.bf16.msra.mxu0 0
        %1452 = vmatprep.subr.bf16.mxu0 0
        %1453 = vmatpush1.bf16.msra.mxu0 0
        %1454 = vmatprep.subr.bf16.mxu0 0
        %1455 = vmatpush1.bf16.msra.mxu0 0
        %1456 = vmatprep.subr.bf16.mxu0 0
        %1457 = vmatpush1.bf16.msra.mxu0 0
        %1458 = vmatprep.subr.bf16.mxu0 0
        %1459 = vmatpush1.bf16.msra.mxu0 0
        %1460 = vmatprep.subr.bf16.mxu0 0
        %1461 = vmatpush1.bf16.msra.mxu0 0
        %1462 = vmatprep.subr.bf16.mxu0 0
        %1463 = vmatpush1.bf16.msra.mxu0 0
        %1464 = vmatprep.subr.bf16.mxu0 0
        %1465 = vmatpush1.bf16.msra.mxu0 0
        %1466 = vmatprep.subr.bf16.mxu0 0
        %1467 = vmatpush1.bf16.msra.mxu0 0
        %1468 = vmatprep.subr.bf16.mxu0 0
        %1469 = vmatpush1.bf16.msra.mxu0 0
        %1470 = vmatprep.subr.bf16.mxu0 0
        %1471 = vmatpush1.bf16.msra.mxu0 0
        %1472 = vmatprep.subr.bf16.mxu0 0
        %1473 = vmatpush1.bf16.msra.mxu0 0
        %1474 = vmatprep.subr.bf16.mxu0 0
        %1475 = vmatpush1.bf16.msra.mxu0 0
        %1476 = vmatprep.subr.bf16.mxu0 0
        %1477 = vmatpush1.bf16.msra.mxu0 0
        %1478 = vmatprep.mubr.bf16.mxu0 0
        %1479 = vmatmul.mubr.bf16.gmra.mrb[0].mxu0 %v1444
        %v1480 = vpop.f32.mrb[0].mxu0
        %v1481 = vadd.f32 0.0, %v1480
        %v1482 = vpop.f32.mrb[0].mxu0
        %v1483 = vpop.f32.mrb[0].mxu0
        %v1484 = vpop.f32.mrb[0].mxu0
        %1485 = vdwg.mxu0
        %v1486 = vpack.c.bf16 %v1481, %v1481
        %v1488 = vsel %vm652, %v1486, 0
        %1490 = vmatprep.subr.bf16.mxu0 0
        %1491 = vmatpush1.bf16.xpose.msra.mxu0 %v1444
        %1492 = vmatprep.subr.bf16.mxu0 0
        %1493 = vmatpush1.bf16.xpose.msra.mxu0 0
        %1494 = vmatprep.subr.bf16.mxu0 0
        %1495 = vmatpush1.bf16.xpose.msra.mxu0 0
        %1496 = vmatprep.subr.bf16.mxu0 0
        %1497 = vmatpush1.bf16.xpose.msra.mxu0 0
        %1498 = vmatprep.subr.bf16.mxu0 0
        %1499 = vmatpush1.bf16.xpose.msra.mxu0 0
        %1500 = vmatprep.subr.bf16.mxu0 0
        %1501 = vmatpush1.bf16.xpose.msra.mxu0 0
        %1502 = vmatprep.subr.bf16.mxu0 0
        %1503 = vmatpush1.bf16.xpose.msra.mxu0 0
        %1504 = vmatprep.subr.bf16.mxu0 0
        %1505 = vmatpush1.bf16.xpose.msra.mxu0 0
        %1506 = vmatprep.subr.bf16.mxu0 0
        %1507 = vmatpush1.bf16.xpose.msra.mxu0 0
        %1508 = vmatprep.subr.bf16.mxu0 0
        %1509 = vmatpush1.bf16.xpose.msra.mxu0 0
        %1510 = vmatprep.subr.bf16.mxu0 0
        %1511 = vmatpush1.bf16.xpose.msra.mxu0 0
        %1512 = vmatprep.subr.bf16.mxu0 0
        %1513 = vmatpush1.bf16.xpose.msra.mxu0 0
        %1514 = vmatprep.subr.bf16.mxu0 0
        %1515 = vmatpush1.bf16.xpose.msra.mxu0 0
        %1516 = vmatprep.subr.bf16.mxu0 0
        %1517 = vmatpush1.bf16.xpose.msra.mxu0 0
        %1518 = vmatprep.subr.bf16.mxu0 0
        %1519 = vmatpush1.bf16.xpose.msra.mxu0 0
        %1520 = vmatprep.subr.bf16.mxu0 0
        %1521 = vmatpush1.bf16.xpose.msra.mxu0 0
        %1522 = vmatprep.mubr.bf16.mxu0 0
        %1523 = vmatmul.mubr.bf16.gmra.mrb[0].mxu0 %v1488
        %v1524 = vpop.f32.mrb[0].mxu0
        %v1525 = vadd.f32 0.0, %v1524
        %v1526 = vpop.f32.mrb[0].mxu0
        %v1527 = vpop.f32.mrb[0].mxu0
        %v1528 = vpop.f32.mrb[0].mxu0
        %1529 = vdwg.mxu0
        %1530 = vst.msk [vmem:[%s622] sm:$0xff] %vm839, %v1525
        %v1531 = vld [vmem:[%s12] sm:$0x1]
        %v1532 = vld [vmem:[#allocation2] sm:$0x1]
        %1534 = vset.pattern.permute.xlu0 0
        %1535 = vperm.xlu0 %1534, %v1532
        %v1536 = vpop.permute.xlu0 %1535
        %v1538 = vlaneseq
        %v1539 = vshrl.u32 %v1538, 7
        %v1540 = vsub.s32 0, %v1539
        %v1541 = vrot.slane %v1536, %v1540
        %v1543 = vsel %vm652, %v1531, 0
        %1545 = vmatprep.subr.bf16.mxu0 0
        %1546 = vmatpush1.bf16.xpose.msra.mxu0 %v1444
        %1547 = vmatprep.subr.bf16.mxu0 0
        %1548 = vmatpush1.bf16.xpose.msra.mxu0 0
        %1549 = vmatprep.subr.bf16.mxu0 0
        %1550 = vmatpush1.bf16.xpose.msra.mxu0 0
        %1551 = vmatprep.subr.bf16.mxu0 0
        %1552 = vmatpush1.bf16.xpose.msra.mxu0 0
        %1553 = vmatprep.subr.bf16.mxu0 0
        %1554 = vmatpush1.bf16.xpose.msra.mxu0 0
        %1555 = vmatprep.subr.bf16.mxu0 0
        %1556 = vmatpush1.bf16.xpose.msra.mxu0 0
        %1557 = vmatprep.subr.bf16.mxu0 0
        %1558 = vmatpush1.bf16.xpose.msra.mxu0 0
        %1559 = vmatprep.subr.bf16.mxu0 0
        %1560 = vmatpush1.bf16.xpose.msra.mxu0 0
        %1561 = vmatprep.subr.bf16.mxu0 0
        %1562 = vmatpush1.bf16.xpose.msra.mxu0 0
        %1563 = vmatprep.subr.bf16.mxu0 0
        %1564 = vmatpush1.bf16.xpose.msra.mxu0 0
        %1565 = vmatprep.subr.bf16.mxu0 0
        %1566 = vmatpush1.bf16.xpose.msra.mxu0 0
        %1567 = vmatprep.subr.bf16.mxu0 0
        %1568 = vmatpush1.bf16.xpose.msra.mxu0 0
        %1569 = vmatprep.subr.bf16.mxu0 0
        %1570 = vmatpush1.bf16.xpose.msra.mxu0 0
        %1571 = vmatprep.subr.bf16.mxu0 0
        %1572 = vmatpush1.bf16.xpose.msra.mxu0 0
        %1573 = vmatprep.subr.bf16.mxu0 0
        %1574 = vmatpush1.bf16.xpose.msra.mxu0 0
        %1575 = vmatprep.subr.bf16.mxu0 0
        %1576 = vmatpush1.bf16.xpose.msra.mxu0 0
        %1577 = vmatprep.mubr.bf16.mxu0 0
        %1578 = vmatmul.mubr.bf16.gmra.mrb[0].mxu0 %v1543
        %v1579 = vpop.f32.mrb[0].mxu0
        %v1580 = vadd.f32 %v1541, %v1579
        %v1581 = vpop.f32.mrb[0].mxu0
        %v1582 = vpop.f32.mrb[0].mxu0
        %v1583 = vpop.f32.mrb[0].mxu0
        %1584 = vdwg.mxu0
        %v1585 = vxor.u32 %v1580, 2147483648
        %v1586 = vmul.f32 %v1585, 1.442695
        %v1587 = vpow.pop %v1586
        %v1588 = vadd.f32 %v1587, 1.0
        %v1589 = vrcp.pop %v1588
        %v1590 = vmul.f32 1.0, %v1589
        %vm1591 = vcmask 57344
        %1592 = vst.msk [vmem:[%s628] sm:$0x1] %vm1591, %v1590
        %s1593 = sand.u32 %s355, 1
        %s1594 = scalar_lea.sflag [#allocation5], %s1593
        %s1595 = sand.u32 %s355, 1
        %s1596 = smul.addr %s1595, 8
        %s1597 = scalar_lea.vmem [#allocation15], %s1596
        %s1598 = sand.u32 %s381, 1
        %s1599 = scalar_lea.sflag [#allocation17], %s1598
        %s1600 = sand.u32 %s381, 1
        %s1601 = scalar_lea.vmem [#allocation16], %s1600
        // Predicated region
        $region105: #{tpu_custom_call.1} parent=75 // pred_check
          %p1602 = pneg %p365
        $region106: #{tpu_custom_call.1} parent=75 // pred_check_branch
          %1604 = sbr.rel (%p1602) target = $region108
        $region107: #{tpu_custom_call.1} parent=75 // pred_region
          %s1606 = ssub.s32 128, 128
          %1607 = vsyncadd %s1594, %s1606
          %s1608 = smul.addr %s43, 128
          %s1609 = scalar_lea.hbm %s14, %s1608
          %s1611 = sshll.u32 %s1597, 4
          %s1612 = int_to_ptr.vmem [resolvable:$true] %s1611
          %1614 = dma.vmem_to_hbm [thread:$0]  %s1612, 128, %s1609, %s1594
        $region108: #{tpu_custom_call.1} parent=75 // pred_fallthru
          _
        // Predicated region
        $region109: #{tpu_custom_call.1} parent=75 // pred_check
          %p1615 = pneg %p391
        $region110: #{tpu_custom_call.1} parent=75 // pred_check_branch
          %1617 = sbr.rel (%p1615) target = $region112
        $region111: #{tpu_custom_call.1} parent=75 // pred_region
          %s1619 = ssub.s32 16, 16
          %1620 = vsyncadd %s1599, %s1619
          %s1621 = smul.addr %s43, 16
          %s1622 = scalar_lea.hbm %s15, %s1621
          %s1624 = sshll.u32 %s1601, 4
          %s1625 = int_to_ptr.vmem [resolvable:$true] %s1624
          %1627 = dma.vmem_to_hbm [thread:$0]  %s1625, 16, %s1622, %s1599
        $region112: #{tpu_custom_call.1} parent=75 // pred_fallthru
          _
      $region76: #{tpu_custom_call.1} parent=5 // pred_fallthru
        _
      %p1628 = scmp.le.s32.totalorder 2, %s38
      // Predicated region
      $region113: #{tpu_custom_call.1} parent=5 // pred_check
        %p1629 = pneg %p1628
      $region114: #{tpu_custom_call.1} parent=5 // pred_check_branch
        %1631 = sbr.rel (%p1629) target = $region116
      $region115: #{tpu_custom_call.1} parent=5 // pred_region
        %s1632 = ssub.s32 %s38, 2
        // Predicated region
        $region117: #{tpu_custom_call.1} parent=115 // pred_check
          %p1633 = pneg %p371
        $region118: #{tpu_custom_call.1} parent=115 // pred_check_branch
          %1635 = sbr.rel (%p1633) target = $region120
        $region119: #{tpu_custom_call.1} parent=115 // pred_region
          %s1636 = sand.u32 %s356, 1
          %s1637 = scalar_lea.sflag [#allocation5], %s1636
          %s1638 = sand.u32 %s356, 1
          %s1639 = smul.addr %s1638, 8
          %s1640 = scalar_lea.vmem [#allocation15], %s1639
          %1641 = dma.done %s1637, 128
        $region120: #{tpu_custom_call.1} parent=115 // pred_fallthru
          _
        // Predicated region
        $region121: #{tpu_custom_call.1} parent=115 // pred_check
          %p1642 = pneg %p397
        $region122: #{tpu_custom_call.1} parent=115 // pred_check_branch
          %1644 = sbr.rel (%p1642) target = $region124
        $region123: #{tpu_custom_call.1} parent=115 // pred_region
          %s1645 = sand.u32 %s382, 1
          %s1646 = scalar_lea.sflag [#allocation17], %s1645
          %s1647 = sand.u32 %s382, 1
          %s1648 = scalar_lea.vmem [#allocation16], %s1647
          %1649 = dma.done %s1646, 16
        $region124: #{tpu_custom_call.1} parent=115 // pred_fallthru
          _
      $region116: #{tpu_custom_call.1} parent=5 // pred_fallthru
        _
    $region6: #{tpu_custom_call.1} parent=1 // loop_footer
      %s42 = sadd.s32 1, %s38
    $region7: #{tpu_custom_call.1} parent=1 // loop_footer_branch
      %37 = sbr.rel target = $region3
    $region8: #{tpu_custom_call.1} parent=1 // loop_exit
      _
    %1650 = vsyncpa [#allocation4], 1
    %s1651 = scalar_lea.sflag [#allocation4], 1
    %1652 = vsyncpa %s1651, 1
    %1653 = vsyncpa [#allocation7], 1
    %s1654 = scalar_lea.sflag [#allocation7], 1
    %1655 = vsyncpa %s1654, 1
    %1656 = vsyncpa [#allocation10], 1
    %1657 = vsyncpa [#allocation13], 1
    %1658 = vsyncpa [#allocation5], 1
    %s1659 = scalar_lea.sflag [#allocation5], 1
    %1660 = vsyncpa %s1659, 1
    %1661 = vsyncpa [#allocation17], 1
    %s1662 = scalar_lea.sflag [#allocation17], 1
    %1663 = vsyncpa %s1662, 1

</llo_original>
